<compile_context>
chip_gen: v6e
topology: v6e:2x2x1
jax: 0.10.0
libtpu: 0.0.40
codegen_flags: <defaults>
</compile_context>

<pallas_src>
import functools

import jax
import jax.numpy as jnp
from jax.experimental import pallas as pl
from jax.experimental.pallas import tpu as pltpu


# ----------------------------------------------------------------------------
# Encoder kernel: one grid step == `bb` batch elements, all N points in VMEM.
#   first_conv : Linear(3->128) [BN folded] + ReLU + Linear(128->256)
#   global max over points, "concat" handled as split matmul -> 512 channels
#   second_conv: Linear(512->512) [BN folded] + ReLU + Linear(512->feat_dim)
#   global max over points -> (bb, feat_dim)
# ----------------------------------------------------------------------------
def encoder_kernel(x_ref, w1_ref, b1_ref, w2_ref, b2_ref,
                   w3g_ref, w3l_ref, b3_ref, w4_ref, b4_ref, out_ref):
    bb, N, _ = x_ref.shape[1:]
    x = x_ref[0].reshape(bb * N, 3)                                      # fp32, K=3

    # first_conv (BN folded into w1/b1) + ReLU   (K=3 matmul kept fp32: free)
    h = jnp.dot(x, w1_ref[...], preferred_element_type=jnp.float32) + b1_ref[...]
    h = jnp.maximum(h, 0.0)
    f = jnp.dot(h.astype(jnp.bfloat16), w2_ref[...],
                preferred_element_type=jnp.float32) + b2_ref[...]        # (bb*N, 256)

    # global max over points per batch element
    g = jnp.max(f.reshape(bb, N, -1), axis=1)                            # (bb, 256)

    # cat([g_expand, f], ch) @ w3  ==  g @ w3[:256] (bcast rows) + f @ w3[256:]
    hg = jnp.dot(g.astype(jnp.bfloat16), w3g_ref[...],
                 preferred_element_type=jnp.float32)                     # (bb, 512)
    hl = jnp.dot(f.astype(jnp.bfloat16), w3l_ref[...],
                 preferred_element_type=jnp.float32)                     # (bb*N, 512)
    h2 = hl.reshape(bb, N, -1) + hg[:, None, :] + b3_ref[...]
    h2 = jnp.maximum(h2, 0.0).reshape(bb * N, -1)                        # BN folded + ReLU

    f4 = jnp.dot(h2.astype(jnp.bfloat16), w4_ref[...],
                 preferred_element_type=jnp.float32) + b4_ref[...]       # (bb*N, feat)
    out_ref[0] = jnp.max(f4.reshape(bb, N, -1), axis=1)                  # (bb, feat)


def encoder_forward(x, p):
    B, N, _ = x.shape
    feat_dim = p["e_w4"].shape[1]

    # Choose bb so the grid has >= 2 "parallel" steps whenever B >= 2 so v7x's
    # two TensorCores both get work (no effect on single-TC v5e/v6e).
    cands = [c for c in (4, 2, 1) if B % c == 0 and B // c >= 2]
    bb = cands[0] if cands else B
    G = B // bb
    x4 = x.reshape(G, bb, N, 3)

    weights = [p["e_w1"], p["e_b1"], p["e_w2"], p["e_b2"],
               p["e_w3g"], p["e_w3l"], p["e_b3"], p["e_w4"], p["e_b4"]]

    def full_spec(arr):
        nd = arr.ndim
        return pl.BlockSpec(arr.shape, lambda i, _nd=nd: (0,) * _nd)

    out = pl.pallas_call(
        encoder_kernel,
        out_shape=jax.ShapeDtypeStruct((G, bb, feat_dim), jnp.float32),
        grid=(G,),
        in_specs=[pl.BlockSpec((1, bb, N, 3), lambda i: (i, 0, 0, 0))]
                 + [full_spec(w) for w in weights],
        out_specs=pl.BlockSpec((1, bb, feat_dim), lambda i: (i, 0, 0)),
        compiler_params=pltpu.CompilerParams(dimension_semantics=("parallel",)),
    )(x4, *weights)
    return out.reshape(B, feat_dim)


# ----------------------------------------------------------------------------
# Fused decoder: single pallas_call for
#   z -> Linear(2048)+ReLU -> Linear(2048)+ReLU -> Linear(2048)+ReLU -> Linear(3*n)
# Activations live in bf16 VMEM scratch (hA/hB ping-pong); bf16 weights stream
# from HBM as column tiles through a manually double-buffered DMA pipeline.
# Fully static Python unroll (the tile schedule is tiny), so the LLO scheduler
# sees everything and weight DMA for tile t+1 overlaps the matmul of tile t.
# ----------------------------------------------------------------------------
def decoder_kernel(x_ref, b1_ref, b2_ref, b3_ref, b4_ref,
                   w1_hbm, w2_hbm, w3_hbm, w4_hbm, out_ref,
                   wbuf, hA, hB, sem,
                   *, tiles, k_dims, tn_list):
    w_hbm = (w1_hbm, w2_hbm, w3_hbm, w4_hbm)
    b_refs = (b1_ref, b2_ref, b3_ref, b4_ref)
    h_in = (None, hA, hB, hA)        # layer l reads h_in[l] (layer 0 reads x)
    h_out = (hA, hB, hA, None)       # layer 3 writes out_ref

    x_bf = x_ref[...].astype(jnp.bfloat16)   # cast once; reused by all layer-0 tiles

    def make_copy(t, slot):
        l, j = tiles[t]
        K, tn = k_dims[l], tn_list[l]
        c = j * tn
        return pltpu.make_async_copy(w_hbm[l].at[:, c:c + tn],
                                     wbuf.at[slot, :K, :tn],
                                     sem.at[slot])

    T = len(tiles)
    descs = [None] * T
    descs[0] = make_copy(0, 0)
    descs[0].start()

    for t in range(T):               # static unroll (T ~ 13 tiles)
        slot = t & 1
        descs[t].wait()
        if t + 1 < T:                # prefetch next weight tile into the other slot
            descs[t + 1] = make_copy(t + 1, 1 - slot)
            descs[t + 1].start()

        l, j = tiles[t]
        K, tn = k_dims[l], tn_list[l]
        c = j * tn
        lhs = x_bf if l == 0 else h_in[l][...]
        y = jnp.dot(lhs, wbuf[slot, :K, :tn],
                    preferred_element_type=jnp.float32) + b_refs[l][:, c:c + tn]
        if l < 3:
            y = jnp.maximum(y, 0.0)
            h_out[l][:, c:c + tn] = y.astype(jnp.bfloat16)
        else:
            out_ref[:, c:c + tn] = y


def decoder_forward(feat, p):
    M, feat_dim = feat.shape
    w_list = [p["d_w1"], p["d_w2"], p["d_w3"], p["d_w4"]]
    b_list = [p["d_b1"], p["d_b2"], p["d_b3"], p["d_b4"]]
    nout = p["d_nout"]

    k_dims = tuple(int(w.shape[0]) for w in w_list)
    n_dims = tuple(int(w.shape[1]) for w in w_list)
    H = n_dims[0]
    assert k_dims[0] == feat_dim
    assert n_dims[1] == n_dims[2] == H and k_dims[1] == k_dims[2] == k_dims[3] == H
    assert all(nc % 128 == 0 for nc in n_dims)   # padded once in init_params

    # Lane-aligned column tiles: 512 keeps the double-buffered weight scratch at
    # ~4 MB (safe under every chip's scoped-VMEM default) while DMAs stay large.
    def pick_tn(nc):
        for c in (512, 384, 256, 128):
            if nc % c == 0:
                return c
        return 128
    tn_list = tuple(pick_tn(nc) for nc in n_dims)
    tiles = tuple((l, j) for l in range(4) for j in range(n_dims[l] // tn_list[l]))

    kmax = max(k_dims)
    tnmax = max(tn_list)
    Np4 = n_dims[3]

    out = pl.pallas_call(
        functools.partial(decoder_kernel, tiles=tiles, k_dims=k_dims,
                          tn_list=tn_list),
        out_shape=jax.ShapeDtypeStruct((M, Np4), jnp.float32),
        in_specs=([pl.BlockSpec(memory_space=pltpu.MemorySpace.VMEM)] * 5    # x, b1..b4 resident
                  + [pl.BlockSpec(memory_space=pl.ANY)] * 4),                # w1..w4 stay in HBM
        out_specs=pl.BlockSpec(memory_space=pltpu.MemorySpace.VMEM),
        scratch_shapes=[
            pltpu.VMEM((2, kmax, tnmax), jnp.bfloat16),   # weight-tile ping-pong buffer
            pltpu.VMEM((M, H), jnp.bfloat16),             # hA (activations, bf16)
            pltpu.VMEM((M, H), jnp.bfloat16),             # hB
            pltpu.SemaphoreType.DMA((2,)),
        ],
    )(feat, *b_list, *w_list)
    return out[:, :nout]


# ----------------------------------------------------------------------------
# Parameters (deterministic, trunc-normal std=0.02 like the PyTorch init).
# Eval-mode BN (mean=0, var=1, gamma=1, beta=0) folded into conv1 / conv3.
# Decoder weights bf16 (fp32 accumulation on the MXU); lane padding done once.
# ----------------------------------------------------------------------------
def trunc_normal(key, shape, std=0.02):
    return std * jax.random.truncated_normal(key, -2.0, 2.0, shape, jnp.float32)


def init_params(key, feat_dim, n_points):
    ks = jax.random.split(key, 8)
    eps = 1e-5
    bn_scale = 1.0 / jnp.sqrt(jnp.float32(1.0 + eps))   # gamma=1, var=1, mean=0, beta=0

    p = {}
    # Encoder (Conv1d k=1 weights stored channels-last as (C_in, C_out)).
    p["e_w1"] = (trunc_normal(ks[0], (3, 128)) * bn_scale).astype(jnp.float32)  # BN1 folded, kept fp32
    p["e_b1"] = jnp.zeros((1, 128), jnp.float32)
    p["e_w2"] = trunc_normal(ks[1], (128, 256)).astype(jnp.bfloat16)
    p["e_b2"] = jnp.zeros((1, 256), jnp.float32)
    w3 = trunc_normal(ks[2], (512, 512)) * bn_scale      # BN2 folded into conv3
    p["e_w3g"] = w3[:256, :].astype(jnp.bfloat16)        # rows hit by global feature (cat order [global, local])
    p["e_w3l"] = w3[256:, :].astype(jnp.bfloat16)        # rows hit by per-point feature
    p["e_b3"] = jnp.zeros((1, 512), jnp.float32)
    p["e_w4"] = trunc_normal(ks[3], (512, feat_dim)).astype(jnp.bfloat16)
    p["e_b4"] = jnp.zeros((1, feat_dim), jnp.float32)

    # Decoder MLP: feat_dim -> 2048 -> 2048 -> 2048 -> 3*n_points (bf16 weights).
    nout = 3 * n_points
    pad = (-nout) % 128                                   # pad ONCE here, never per call
    p["d_nout"] = nout
    p["d_w1"] = trunc_normal(ks[4], (feat_dim, 2048)).astype(jnp.bfloat16)
    p["d_b1"] = jnp.zeros((1, 2048), jnp.float32)
    p["d_w2"] = trunc_normal(ks[5], (2048, 2048)).astype(jnp.bfloat16)
    p["d_b2"] = jnp.zeros((1, 2048), jnp.float32)
    p["d_w3"] = trunc_normal(ks[6], (2048, 2048)).astype(jnp.bfloat16)
    p["d_b3"] = jnp.zeros((1, 2048), jnp.float32)
    w4 = trunc_normal(ks[7], (2048, nout))
    p["d_w4"] = jnp.pad(w4, ((0, 0), (0, pad))).astype(jnp.bfloat16)
    p["d_b4"] = jnp.zeros((1, nout + pad), jnp.float32)
    return p


# ----------------------------------------------------------------------------
# P2C.forward(partial) == Decoder(Encoder(partial)).reshape(B, n_points, 3)
# ----------------------------------------------------------------------------
def p2c_forward(partial_pts, params, n_points):
    B = partial_pts.shape[0]
    feat = encoder_forward(partial_pts, params)          # (B, feat_dim)
    flat = decoder_forward(feat, params)                 # (B, 3*n_points)
    return flat.reshape(B, n_points, 3)                  # matches .reshape(bs, -1, 3)


if __name__ == "__main__":
    B, N = 2, 128          # small partial point cloud: (B, N, 3)
    feat_dim = 256         # config.feat_dim
    n_points = 128         # config.n_points (decoder outputs 3*n_points)

    key = jax.random.PRNGKey(0)
    pkey, xkey = jax.random.split(key)
    params = init_params(pkey, feat_dim, n_points)
    partial_pts = jax.random.normal(xkey, (B, N, 3), jnp.float32)

    pred = p2c_forward(partial_pts, params, n_points)
    pred = jax.block_until_ready(pred)

    assert pred.shape == (B, n_points, 3), pred.shape
    assert pred.dtype == jnp.float32
    assert bool(jnp.all(jnp.isfinite(pred)))
    print("KERNEL_OK")
</pallas_src>

<mosaic_0001>
module attributes {stable_mosaic.version = 11 : i64} {
  func.func @encoder_kernel(%arg0: i32, %arg1: memref<1x1x128x3xf32, #tpu.memory_space<vmem>>, %arg2: memref<3x128xf32, #tpu.memory_space<vmem>>, %arg3: memref<1x128xf32, #tpu.memory_space<vmem>>, %arg4: memref<128x256xbf16, #tpu.memory_space<vmem>>, %arg5: memref<1x256xf32, #tpu.memory_space<vmem>>, %arg6: memref<256x512xbf16, #tpu.memory_space<vmem>>, %arg7: memref<256x512xbf16, #tpu.memory_space<vmem>>, %arg8: memref<1x512xf32, #tpu.memory_space<vmem>>, %arg9: memref<512x256xbf16, #tpu.memory_space<vmem>>, %arg10: memref<1x256xf32, #tpu.memory_space<vmem>>, %arg11: memref<1x1x256xf32, #tpu.memory_space<vmem>>) attributes {dimension_semantics = [#tpu.dimension_semantics<parallel>], iteration_bounds = array<i64: 2>, scalar_prefetch = 0 : i64, scratch_operands = 0 : i64, tpu.core_type = #tpu.core_type<tc>, window_params = [{transform_indices = @transform_0, window_bounds = array<i64: 1, 1, 128, 3>}, {pipeline_mode = #tpu.pipeline_mode<synchronous>, transform_indices = @transform_1, window_bounds = array<i64: 3, 128>}, {pipeline_mode = #tpu.pipeline_mode<synchronous>, transform_indices = @transform_2, window_bounds = array<i64: 1, 128>}, {pipeline_mode = #tpu.pipeline_mode<synchronous>, transform_indices = @transform_3, window_bounds = array<i64: 128, 256>}, {pipeline_mode = #tpu.pipeline_mode<synchronous>, transform_indices = @transform_4, window_bounds = array<i64: 1, 256>}, {pipeline_mode = #tpu.pipeline_mode<synchronous>, transform_indices = @transform_5, window_bounds = array<i64: 256, 512>}, {pipeline_mode = #tpu.pipeline_mode<synchronous>, transform_indices = @transform_6, window_bounds = array<i64: 256, 512>}, {pipeline_mode = #tpu.pipeline_mode<synchronous>, transform_indices = @transform_7, window_bounds = array<i64: 1, 512>}, {pipeline_mode = #tpu.pipeline_mode<synchronous>, transform_indices = @transform_8, window_bounds = array<i64: 512, 256>}, {pipeline_mode = #tpu.pipeline_mode<synchronous>, transform_indices = @transform_9, window_bounds = array<i64: 1, 256>}, {transform_indices = @transform_10, window_bounds = array<i64: 1, 1, 256>}]} {
    %c0 = arith.constant 0 : index
    %c0_0 = arith.constant 0 : index
    %c0_1 = arith.constant 0 : index
    %c0_2 = arith.constant 0 : index
    %0 = vector.load %arg1[%c0, %c0_0, %c0_1, %c0_2] : memref<1x1x128x3xf32, #tpu.memory_space<vmem>>, vector<1x1x128x3xf32>
    %1 = vector.shape_cast %0 : vector<1x1x128x3xf32> to vector<1x128x3xf32>
    %2 = vector.shape_cast %1 : vector<1x128x3xf32> to vector<128x3xf32>
    %c0_3 = arith.constant 0 : index
    %c0_4 = arith.constant 0 : index
    %3 = vector.load %arg2[%c0_3, %c0_4] : memref<3x128xf32, #tpu.memory_space<vmem>>, vector<3x128xf32>
    %cst = arith.constant dense<0.000000e+00> : vector<128x128xf32>
    %4 = tpu.matmul %2, %3, %cst {dimension_numbers = #tpu.dot_dimension_numbers<[1], [0], [0], [1], [0, 0, 1, 1], [], []>} : vector<128x3xf32>, vector<3x128xf32>, vector<128x128xf32> -> vector<128x128xf32>
    %c0_5 = arith.constant 0 : index
    %c0_6 = arith.constant 0 : index
    %5 = vector.load %arg3[%c0_5, %c0_6] : memref<1x128xf32, #tpu.memory_space<vmem>>, vector<1x128xf32>
    %6 = vector.broadcast %5 : vector<1x128xf32> to vector<128x128xf32>
    %7 = arith.addf %4, %6 : vector<128x128xf32>
    %cst_7 = arith.constant 0.000000e+00 : f32
    %8 = vector.broadcast %cst_7 : f32 to vector<128x128xf32>
    %9 = arith.maximumf %7, %8 : vector<128x128xf32>
    %10 = arith.truncf %9 : vector<128x128xf32> to vector<128x128xbf16>
    %c0_8 = arith.constant 0 : index
    %c0_9 = arith.constant 0 : index
    %11 = vector.load %arg4[%c0_8, %c0_9] : memref<128x256xbf16, #tpu.memory_space<vmem>>, vector<128x256xbf16>
    %cst_10 = arith.constant dense<0.000000e+00> : vector<128x256xf32>
    %12 = tpu.matmul %10, %11, %cst_10 {dimension_numbers = #tpu.dot_dimension_numbers<[1], [0], [0], [1], [0, 0, 1, 1], [], []>} : vector<128x128xbf16>, vector<128x256xbf16>, vector<128x256xf32> -> vector<128x256xf32>
    %c0_11 = arith.constant 0 : index
    %c0_12 = arith.constant 0 : index
    %13 = vector.load %arg5[%c0_11, %c0_12] : memref<1x256xf32, #tpu.memory_space<vmem>>, vector<1x256xf32>
    %14 = vector.broadcast %13 : vector<1x256xf32> to vector<128x256xf32>
    %15 = arith.addf %12, %14 : vector<128x256xf32>
    %16 = vector.shape_cast %15 : vector<128x256xf32> to vector<1x128x256xf32>
    %cst_13 = arith.constant dense<0xFF800000> : vector<1x256xf32>
    %17 = vector.multi_reduction <maximumf>, %16, %cst_13 [1] : vector<1x128x256xf32> to vector<1x256xf32>
    %18 = arith.truncf %17 : vector<1x256xf32> to vector<1x256xbf16>
    %c0_14 = arith.constant 0 : index
    %c0_15 = arith.constant 0 : index
    %19 = vector.load %arg6[%c0_14, %c0_15] : memref<256x512xbf16, #tpu.memory_space<vmem>>, vector<256x512xbf16>
    %cst_16 = arith.constant dense<0.000000e+00> : vector<1x512xf32>
    %20 = tpu.matmul %18, %19, %cst_16 {dimension_numbers = #tpu.dot_dimension_numbers<[1], [0], [0], [1], [0, 0, 1, 1], [], []>} : vector<1x256xbf16>, vector<256x512xbf16>, vector<1x512xf32> -> vector<1x512xf32>
    %21 = arith.truncf %15 : vector<128x256xf32> to vector<128x256xbf16>
    %c0_17 = arith.constant 0 : index
    %c0_18 = arith.constant 0 : index
    %22 = vector.load %arg7[%c0_17, %c0_18] : memref<256x512xbf16, #tpu.memory_space<vmem>>, vector<256x512xbf16>
    %cst_19 = arith.constant dense<0.000000e+00> : vector<128x512xf32>
    %23 = tpu.matmul %21, %22, %cst_19 {dimension_numbers = #tpu.dot_dimension_numbers<[1], [0], [0], [1], [0, 0, 1, 1], [], []>} : vector<128x256xbf16>, vector<256x512xbf16>, vector<128x512xf32> -> vector<128x512xf32>
    %24 = vector.shape_cast %23 : vector<128x512xf32> to vector<1x128x512xf32>
    %25 = vector.shape_cast %20 : vector<1x512xf32> to vector<1x1x512xf32>
    %26 = vector.broadcast %25 : vector<1x1x512xf32> to vector<1x128x512xf32>
    %27 = arith.addf %24, %26 : vector<1x128x512xf32>
    %c0_20 = arith.constant 0 : index
    %c0_21 = arith.constant 0 : index
    %28 = vector.load %arg8[%c0_20, %c0_21] : memref<1x512xf32, #tpu.memory_space<vmem>>, vector<1x512xf32>
    %29 = vector.shape_cast %28 : vector<1x512xf32> to vector<1x1x512xf32>
    %30 = vector.broadcast %29 : vector<1x1x512xf32> to vector<1x128x512xf32>
    %31 = arith.addf %27, %30 : vector<1x128x512xf32>
    %cst_22 = arith.constant 0.000000e+00 : f32
    %32 = vector.broadcast %cst_22 : f32 to vector<1x128x512xf32>
    %33 = arith.maximumf %31, %32 : vector<1x128x512xf32>
    %34 = vector.shape_cast %33 : vector<1x128x512xf32> to vector<128x512xf32>
    %35 = arith.truncf %34 : vector<128x512xf32> to vector<128x512xbf16>
    %c0_23 = arith.constant 0 : index
    %c0_24 = arith.constant 0 : index
    %36 = vector.load %arg9[%c0_23, %c0_24] : memref<512x256xbf16, #tpu.memory_space<vmem>>, vector<512x256xbf16>
    %cst_25 = arith.constant dense<0.000000e+00> : vector<128x256xf32>
    %37 = tpu.matmul %35, %36, %cst_25 {dimension_numbers = #tpu.dot_dimension_numbers<[1], [0], [0], [1], [0, 0, 1, 1], [], []>} : vector<128x512xbf16>, vector<512x256xbf16>, vector<128x256xf32> -> vector<128x256xf32>
    %c0_26 = arith.constant 0 : index
    %c0_27 = arith.constant 0 : index
    %38 = vector.load %arg10[%c0_26, %c0_27] : memref<1x256xf32, #tpu.memory_space<vmem>>, vector<1x256xf32>
    %39 = vector.broadcast %38 : vector<1x256xf32> to vector<128x256xf32>
    %40 = arith.addf %37, %39 : vector<128x256xf32>
    %41 = vector.shape_cast %40 : vector<128x256xf32> to vector<1x128x256xf32>
    %cst_28 = arith.constant dense<0xFF800000> : vector<1x256xf32>
    %42 = vector.multi_reduction <maximumf>, %41, %cst_28 [1] : vector<1x128x256xf32> to vector<1x256xf32>
    %c0_29 = arith.constant 0 : index
    %c0_30 = arith.constant 0 : index
    %c0_31 = arith.constant 0 : index
    %43 = vector.load %arg11[%c0_29, %c0_30, %c0_31] : memref<1x1x256xf32, #tpu.memory_space<vmem>>, vector<1x1x256xf32>
    %44 = vector.shape_cast %43 : vector<1x1x256xf32> to vector<1x256xf32>
    %45 = vector.shape_cast %42 : vector<1x256xf32> to vector<1x1x256xf32>
    tpu.vector_store %arg11[%c0_29, %c0_30, %c0_31], %45 {strides = array<i32>} : memref<1x1x256xf32, #tpu.memory_space<vmem>>, vector<1x1x256xf32>,
    return
  }
  func.func @transform_0(%arg0: i32) -> (i32, i32, i32, i32) {
    %c0_i32 = arith.constant 0 : i32
    %c0_i32_0 = arith.constant 0 : i32
    %c0_i32_1 = arith.constant 0 : i32
    %c0_i32_2 = arith.constant 0 : i32
    return %arg0, %c0_i32, %c0_i32_0, %c0_i32_1 : i32, i32, i32, i32
  }
  func.func @transform_1(%arg0: i32) -> (i32, i32) {
    %c0_i32 = arith.constant 0 : i32
    %c0_i32_0 = arith.constant 0 : i32
    %c0_i32_1 = arith.constant 0 : i32
    return %c0_i32, %c0_i32_0 : i32, i32
  }
  func.func @transform_2(%arg0: i32) -> (i32, i32) {
    %c0_i32 = arith.constant 0 : i32
    %c0_i32_0 = arith.constant 0 : i32
    %c0_i32_1 = arith.constant 0 : i32
    return %c0_i32, %c0_i32_0 : i32, i32
  }
  func.func @transform_3(%arg0: i32) -> (i32, i32) {
    %c0_i32 = arith.constant 0 : i32
    %c0_i32_0 = arith.constant 0 : i32
    %c0_i32_1 = arith.constant 0 : i32
    return %c0_i32, %c0_i32_0 : i32, i32
  }
  func.func @transform_4(%arg0: i32) -> (i32, i32) {
    %c0_i32 = arith.constant 0 : i32
    %c0_i32_0 = arith.constant 0 : i32
    %c0_i32_1 = arith.constant 0 : i32
    return %c0_i32, %c0_i32_0 : i32, i32
  }
  func.func @transform_5(%arg0: i32) -> (i32, i32) {
    %c0_i32 = arith.constant 0 : i32
    %c0_i32_0 = arith.constant 0 : i32
    %c0_i32_1 = arith.constant 0 : i32
    return %c0_i32, %c0_i32_0 : i32, i32
  }
  func.func @transform_6(%arg0: i32) -> (i32, i32) {
    %c0_i32 = arith.constant 0 : i32
    %c0_i32_0 = arith.constant 0 : i32
    %c0_i32_1 = arith.constant 0 : i32
    return %c0_i32, %c0_i32_0 : i32, i32
  }
  func.func @transform_7(%arg0: i32) -> (i32, i32) {
    %c0_i32 = arith.constant 0 : i32
    %c0_i32_0 = arith.constant 0 : i32
    %c0_i32_1 = arith.constant 0 : i32
    return %c0_i32, %c0_i32_0 : i32, i32
  }
  func.func @transform_8(%arg0: i32) -> (i32, i32) {
    %c0_i32 = arith.constant 0 : i32
    %c0_i32_0 = arith.constant 0 : i32
    %c0_i32_1 = arith.constant 0 : i32
    return %c0_i32, %c0_i32_0 : i32, i32
  }
  func.func @transform_9(%arg0: i32) -> (i32, i32) {
    %c0_i32 = arith.constant 0 : i32
    %c0_i32_0 = arith.constant 0 : i32
    %c0_i32_1 = arith.constant 0 : i32
    return %c0_i32, %c0_i32_0 : i32, i32
  }
  func.func @transform_10(%arg0: i32) -> (i32, i32, i32) {
    %c0_i32 = arith.constant 0 : i32
    %c0_i32_0 = arith.constant 0 : i32
    %c0_i32_1 = arith.constant 0 : i32
    return %arg0, %c0_i32, %c0_i32_0 : i32, i32, i32
  }
}

</mosaic_0001>

<llo_original>
// kernel: tpu_custom_call.1
$region0: #{tpu_custom_call.1}
  #allocation0 [shape = 'u32[]', space=smem, size = 0x4, offset = 0x4, fixed_abs, tag = 'smem constant byte address 0x4 - core index']
  #allocation1 [shape = 'u32[144,128]{1,0:T(1,128)}', space=vmem, size = 0x12000, scoped, tag = 'internal scratch']
  %s0 = inlined_call_operand.vmem [shape: f32[2,1,128,3], index: 0, kind: input, shape index: {}]
  %s1 = inlined_call_operand.vmem [shape: f32[3,128], index: 1, kind: input, shape index: {}]
  %s2 = inlined_call_operand.vmem [shape: f32[1,128], index: 2, kind: input, shape index: {}]
  %s3 = inlined_call_operand.vmem [shape: bf16[128,256], index: 3, kind: input, shape index: {}]
  %s4 = inlined_call_operand.vmem [shape: f32[1,256], index: 4, kind: input, shape index: {}]
  %s5 = inlined_call_operand.hbm [shape: bf16[256,512], index: 5, kind: input, shape index: {}]
  %s6 = inlined_call_operand.hbm [shape: bf16[256,512], index: 6, kind: input, shape index: {}]
  %s7 = inlined_call_operand.vmem [shape: f32[1,512], index: 7, kind: input, shape index: {}]
  %s8 = inlined_call_operand.hbm [shape: bf16[512,256], index: 8, kind: input, shape index: {}]
  %s9 = inlined_call_operand.vmem [shape: f32[1,256], index: 9, kind: input, shape index: {}]
  %s10 = inlined_call_operand.hbm [shape: f32[2,1,256], index: 10, kind: output, shape index: {}]
  %s11 = sld [smem:[#allocation0]]
  $region85: #{tpu_custom_call.1} parent=0
    _
  %s13 = ssub.s32 1, %s11
  %s14 = scalar_select 0, %s13, %s11
  $region1: #{tpu_custom_call.1} parent=0
    #allocation2 [shape = 'u8[262144]{0}', space=vmem, size = 0x40000, scoped, tag = 'input window, operand 5, single buffered']
    #allocation3 [shape = 's32[2]{0}', space=sflag, size = 0x8, scoped, tag = 'scoped memory for tpu_custom_call.1']
    #allocation4 [shape = 's32[2]{0}', space=sflag, size = 0x8, scoped, tag = 'scoped memory for tpu_custom_call.1']
    #allocation5 [shape = 'u8[262144]{0}', space=vmem, size = 0x40000, scoped, tag = 'input window, operand 6, single buffered']
    #allocation6 [shape = 's32[1]{0}', space=sflag, size = 0x4, scoped, tag = 'scoped memory for tpu_custom_call.1']
    #allocation7 [shape = 'u8[262144]{0}', space=vmem, size = 0x40000, scoped, tag = 'input window, operand 8, single buffered']
    #allocation8 [shape = 'u8[2048]{0}', space=vmem, size = 0x800, scoped, tag = 'output window, operand 0']
    %15 = vsyncpa [#allocation3], 0
    %16 = vsyncpa [#allocation6], 0
    %17 = vsyncpa [#allocation4], 0
    %s18 = scalar_lea.sflag [#allocation4], 1
    %19 = vsyncpa %s18, 0
    loop: start=0, step=1, limit=4
    $region2: #{tpu_custom_call.1} parent=1 // loop_pre_header
      _
    $region3: #{tpu_custom_call.1} parent=1 // loop_header
      %s21 = sphi 0, %s25
      %p22 = scmp.ge.s32.totalorder %s21, 4
      %s31 = sphi 0, %s33
      %s34 = sphi 0, %s31
      %s35 = sphi 0, %s34
      %s51 = sphi 0, %s35
      %s55 = sphi 0, %s55
      %s57 = sphi 0, %s55
      %s58 = sphi 0, %s57
      %s72 = sphi 0, %s58
      %s76 = sphi 0, %s76
      %s78 = sphi 0, %s76
      %s79 = sphi 0, %s78
      %s93 = sphi 0, %s79
      %s97 = sphi 0, %s97
      %s99 = sphi 0, %s97
      %s100 = sphi 0, %s99
      %s114 = sphi 0, %s100
      %s118 = sphi 0, %s118
      %s120 = sphi 0, %s118
      %s121 = sphi 0, %s120
      %s135 = sphi 0, %s121
      %s139 = sphi 0, %s139
      %s141 = sphi 0, %s139
      %s142 = sphi 0, %s141
      %s156 = sphi 0, %s142
      %s160 = sphi 0, %s160
      %s162 = sphi 0, %s160
      %s163 = sphi 0, %s162
      %s177 = sphi 0, %s163
      %s181 = sphi 0, %s181
      %s183 = sphi 0, %s181
      %s184 = sphi 0, %s183
      %s198 = sphi 0, %s184
      %s202 = sphi 0, %s202
      %s204 = sphi 0, %s202
      %s205 = sphi 0, %s204
      %s219 = sphi 0, %s205
      %s223 = sphi 0, %s223
      %s225 = sphi 0, %s223
      %s226 = sphi 0, %s225
      %s240 = sphi 0, %s226
      %s246 = sphi 0, %s248
      %s249 = sphi 0, %s246
      %s250 = sphi 0, %s249
      %s266 = sphi 0, %s250
    $region4: #{tpu_custom_call.1} parent=1 // loop_header_branch
      %24 = sbr.rel (%p22) target = $region8
    $region5: #{tpu_custom_call.1} parent=1 // loop_body
      %s26 = ssub.s32 %s21, 1
      %s27 = ssub.s32 %s21, 2
      %s28 = sadd.s32 %s21, 1
      %s29 = ssub.s32 %s21, %s28
      %p30 = scmp.eq.s32.totalorder %s29, 0
      %s32 = sadd.s32 %s31, 1
      %s33 = scalar_select %p30, %s31, %s32
      %p36 = pneg %p30
      %p37 = scmp.eq.s32.totalorder %s21, 1
      %p38 = por %p36, %p37
      %p39 = scmp.ne.s32.totalorder %s31, %s34
      %p40 = scmp.eq.s32.totalorder %s21, 0
      %p41 = por %p39, %p40
      %p42 = scmp.ne.s32.totalorder %s31, %s34
      %p43 = scmp.eq.s32.totalorder %s26, 1
      %p44 = por %p42, %p43
      %p45 = scmp.ne.s32.totalorder %s34, %s35
      %p46 = scmp.eq.s32.totalorder %s26, 0
      %p47 = por %p45, %p46
      %p48 = scmp.ne.s32.totalorder %s34, %s35
      %p49 = scmp.eq.s32.totalorder %s27, 1
      %p50 = por %p48, %p49
      %p52 = scmp.ne.s32.totalorder %s35, %s51
      %p53 = scmp.eq.s32.totalorder %s27, 0
      %p54 = por %p52, %p53
      %s56 = sadd.s32 %s55, 1
      %p59 = scmp.eq.s32.totalorder %s21, 1
      %p60 = scmp.ne.s32.totalorder %s55, %s57
      %p61 = scmp.eq.s32.totalorder %s21, 0
      %p62 = por %p60, %p61
      %p63 = scmp.ne.s32.totalorder %s55, %s57
      %p64 = scmp.eq.s32.totalorder %s26, 1
      %p65 = por %p63, %p64
      %p66 = scmp.ne.s32.totalorder %s57, %s58
      %p67 = scmp.eq.s32.totalorder %s26, 0
      %p68 = por %p66, %p67
      %p69 = scmp.ne.s32.totalorder %s57, %s58
      %p70 = scmp.eq.s32.totalorder %s27, 1
      %p71 = por %p69, %p70
      %p73 = scmp.ne.s32.totalorder %s58, %s72
      %p74 = scmp.eq.s32.totalorder %s27, 0
      %p75 = por %p73, %p74
      %s77 = sadd.s32 %s76, 1
      %p80 = scmp.eq.s32.totalorder %s21, 1
      %p81 = scmp.ne.s32.totalorder %s76, %s78
      %p82 = scmp.eq.s32.totalorder %s21, 0
      %p83 = por %p81, %p82
      %p84 = scmp.ne.s32.totalorder %s76, %s78
      %p85 = scmp.eq.s32.totalorder %s26, 1
      %p86 = por %p84, %p85
      %p87 = scmp.ne.s32.totalorder %s78, %s79
      %p88 = scmp.eq.s32.totalorder %s26, 0
      %p89 = por %p87, %p88
      %p90 = scmp.ne.s32.totalorder %s78, %s79
      %p91 = scmp.eq.s32.totalorder %s27, 1
      %p92 = por %p90, %p91
      %p94 = scmp.ne.s32.totalorder %s79, %s93
      %p95 = scmp.eq.s32.totalorder %s27, 0
      %p96 = por %p94, %p95
      %s98 = sadd.s32 %s97, 1
      %p101 = scmp.eq.s32.totalorder %s21, 1
      %p102 = scmp.ne.s32.totalorder %s97, %s99
      %p103 = scmp.eq.s32.totalorder %s21, 0
      %p104 = por %p102, %p103
      %p105 = scmp.ne.s32.totalorder %s97, %s99
      %p106 = scmp.eq.s32.totalorder %s26, 1
      %p107 = por %p105, %p106
      %p108 = scmp.ne.s32.totalorder %s99, %s100
      %p109 = scmp.eq.s32.totalorder %s26, 0
      %p110 = por %p108, %p109
      %p111 = scmp.ne.s32.totalorder %s99, %s100
      %p112 = scmp.eq.s32.totalorder %s27, 1
      %p113 = por %p111, %p112
      %p115 = scmp.ne.s32.totalorder %s100, %s114
      %p116 = scmp.eq.s32.totalorder %s27, 0
      %p117 = por %p115, %p116
      %s119 = sadd.s32 %s118, 1
      %p122 = scmp.eq.s32.totalorder %s21, 1
      %p123 = scmp.ne.s32.totalorder %s118, %s120
      %p124 = scmp.eq.s32.totalorder %s21, 0
      %p125 = por %p123, %p124
      %p126 = scmp.ne.s32.totalorder %s118, %s120
      %p127 = scmp.eq.s32.totalorder %s26, 1
      %p128 = por %p126, %p127
      %p129 = scmp.ne.s32.totalorder %s120, %s121
      %p130 = scmp.eq.s32.totalorder %s26, 0
      %p131 = por %p129, %p130
      %p132 = scmp.ne.s32.totalorder %s120, %s121
      %p133 = scmp.eq.s32.totalorder %s27, 1
      %p134 = por %p132, %p133
      %p136 = scmp.ne.s32.totalorder %s121, %s135
      %p137 = scmp.eq.s32.totalorder %s27, 0
      %p138 = por %p136, %p137
      %s140 = sadd.s32 %s139, 1
      %p143 = scmp.eq.s32.totalorder %s21, 1
      %p144 = scmp.ne.s32.totalorder %s139, %s141
      %p145 = scmp.eq.s32.totalorder %s21, 0
      %p146 = por %p144, %p145
      %p147 = scmp.ne.s32.totalorder %s139, %s141
      %p148 = scmp.eq.s32.totalorder %s26, 1
      %p149 = por %p147, %p148
      %p150 = scmp.ne.s32.totalorder %s141, %s142
      %p151 = scmp.eq.s32.totalorder %s26, 0
      %p152 = por %p150, %p151
      %p153 = scmp.ne.s32.totalorder %s141, %s142
      %p154 = scmp.eq.s32.totalorder %s27, 1
      %p155 = por %p153, %p154
      %p157 = scmp.ne.s32.totalorder %s142, %s156
      %p158 = scmp.eq.s32.totalorder %s27, 0
      %p159 = por %p157, %p158
      %s161 = sadd.s32 %s160, 1
      %p164 = scmp.eq.s32.totalorder %s21, 1
      %p165 = scmp.ne.s32.totalorder %s160, %s162
      %p166 = scmp.eq.s32.totalorder %s21, 0
      %p167 = por %p165, %p166
      %p168 = scmp.ne.s32.totalorder %s160, %s162
      %p169 = scmp.eq.s32.totalorder %s26, 1
      %p170 = por %p168, %p169
      %p171 = scmp.ne.s32.totalorder %s162, %s163
      %p172 = scmp.eq.s32.totalorder %s26, 0
      %p173 = por %p171, %p172
      %p174 = scmp.ne.s32.totalorder %s162, %s163
      %p175 = scmp.eq.s32.totalorder %s27, 1
      %p176 = por %p174, %p175
      %p178 = scmp.ne.s32.totalorder %s163, %s177
      %p179 = scmp.eq.s32.totalorder %s27, 0
      %p180 = por %p178, %p179
      %s182 = sadd.s32 %s181, 1
      %p185 = scmp.eq.s32.totalorder %s21, 1
      %p186 = scmp.ne.s32.totalorder %s181, %s183
      %p187 = scmp.eq.s32.totalorder %s21, 0
      %p188 = por %p186, %p187
      %p189 = scmp.ne.s32.totalorder %s181, %s183
      %p190 = scmp.eq.s32.totalorder %s26, 1
      %p191 = por %p189, %p190
      %p192 = scmp.ne.s32.totalorder %s183, %s184
      %p193 = scmp.eq.s32.totalorder %s26, 0
      %p194 = por %p192, %p193
      %p195 = scmp.ne.s32.totalorder %s183, %s184
      %p196 = scmp.eq.s32.totalorder %s27, 1
      %p197 = por %p195, %p196
      %p199 = scmp.ne.s32.totalorder %s184, %s198
      %p200 = scmp.eq.s32.totalorder %s27, 0
      %p201 = por %p199, %p200
      %s203 = sadd.s32 %s202, 1
      %p206 = scmp.eq.s32.totalorder %s21, 1
      %p207 = scmp.ne.s32.totalorder %s202, %s204
      %p208 = scmp.eq.s32.totalorder %s21, 0
      %p209 = por %p207, %p208
      %p210 = scmp.ne.s32.totalorder %s202, %s204
      %p211 = scmp.eq.s32.totalorder %s26, 1
      %p212 = por %p210, %p211
      %p213 = scmp.ne.s32.totalorder %s204, %s205
      %p214 = scmp.eq.s32.totalorder %s26, 0
      %p215 = por %p213, %p214
      %p216 = scmp.ne.s32.totalorder %s204, %s205
      %p217 = scmp.eq.s32.totalorder %s27, 1
      %p218 = por %p216, %p217
      %p220 = scmp.ne.s32.totalorder %s205, %s219
      %p221 = scmp.eq.s32.totalorder %s27, 0
      %p222 = por %p220, %p221
      %s224 = sadd.s32 %s223, 1
      %p227 = scmp.eq.s32.totalorder %s21, 1
      %p228 = scmp.ne.s32.totalorder %s223, %s225
      %p229 = scmp.eq.s32.totalorder %s21, 0
      %p230 = por %p228, %p229
      %p231 = scmp.ne.s32.totalorder %s223, %s225
      %p232 = scmp.eq.s32.totalorder %s26, 1
      %p233 = por %p231, %p232
      %p234 = scmp.ne.s32.totalorder %s225, %s226
      %p235 = scmp.eq.s32.totalorder %s26, 0
      %p236 = por %p234, %p235
      %p237 = scmp.ne.s32.totalorder %s225, %s226
      %p238 = scmp.eq.s32.totalorder %s27, 1
      %p239 = por %p237, %p238
      %p241 = scmp.ne.s32.totalorder %s226, %s240
      %p242 = scmp.eq.s32.totalorder %s27, 0
      %p243 = por %p241, %p242
      %s244 = ssub.s32 %s21, %s28
      %p245 = scmp.eq.s32.totalorder %s244, 0
      %s247 = sadd.s32 %s246, 1
      %s248 = scalar_select %p245, %s246, %s247
      %p251 = pneg %p245
      %p252 = scmp.eq.s32.totalorder %s21, 1
      %p253 = por %p251, %p252
      %p254 = scmp.ne.s32.totalorder %s246, %s249
      %p255 = scmp.eq.s32.totalorder %s21, 0
      %p256 = por %p254, %p255
      %p257 = scmp.ne.s32.totalorder %s246, %s249
      %p258 = scmp.eq.s32.totalorder %s26, 1
      %p259 = por %p257, %p258
      %p260 = scmp.ne.s32.totalorder %s249, %s250
      %p261 = scmp.eq.s32.totalorder %s26, 0
      %p262 = por %p260, %p261
      %p263 = scmp.ne.s32.totalorder %s249, %s250
      %p264 = scmp.eq.s32.totalorder %s27, 1
      %p265 = por %p263, %p264
      %p267 = scmp.ne.s32.totalorder %s250, %s266
      %p268 = scmp.eq.s32.totalorder %s27, 0
      %p269 = por %p267, %p268
      %p270 = scmp.le.s32.totalorder 1, %s21
      %p271 = scmp.lt.s32.totalorder %s21, 3
      %p272 = pnand %p270, %p271
      %p273 = pneg %p272
      // Predicated region
      $region9: #{tpu_custom_call.1} parent=5 // pred_check
        _
      $region10: #{tpu_custom_call.1} parent=5 // pred_check_branch
        %275 = sbr.rel (%p272) target = $region12
      $region11: #{tpu_custom_call.1} parent=5 // pred_region
        %s276 = ssub.s32 %s21, 1
        // Predicated region
        $region13: #{tpu_custom_call.1} parent=11 // pred_check
          %p277 = pneg %p68
        $region14: #{tpu_custom_call.1} parent=11 // pred_check_branch
          %279 = sbr.rel (%p277) target = $region16
        $region15: #{tpu_custom_call.1} parent=11 // pred_region
          _
        $region16: #{tpu_custom_call.1} parent=11 // pred_fallthru
          _
        // Predicated region
        $region17: #{tpu_custom_call.1} parent=11 // pred_check
          %p280 = pneg %p89
        $region18: #{tpu_custom_call.1} parent=11 // pred_check_branch
          %282 = sbr.rel (%p280) target = $region20
        $region19: #{tpu_custom_call.1} parent=11 // pred_region
          _
        $region20: #{tpu_custom_call.1} parent=11 // pred_fallthru
          _
        // Predicated region
        $region21: #{tpu_custom_call.1} parent=11 // pred_check
          %p283 = pneg %p110
        $region22: #{tpu_custom_call.1} parent=11 // pred_check_branch
          %285 = sbr.rel (%p283) target = $region24
        $region23: #{tpu_custom_call.1} parent=11 // pred_region
          _
        $region24: #{tpu_custom_call.1} parent=11 // pred_fallthru
          _
        // Predicated region
        $region25: #{tpu_custom_call.1} parent=11 // pred_check
          %p286 = pneg %p131
        $region26: #{tpu_custom_call.1} parent=11 // pred_check_branch
          %288 = sbr.rel (%p286) target = $region28
        $region27: #{tpu_custom_call.1} parent=11 // pred_region
          _
        $region28: #{tpu_custom_call.1} parent=11 // pred_fallthru
          _
        // Predicated region
        $region29: #{tpu_custom_call.1} parent=11 // pred_check
          %p289 = pneg %p152
        $region30: #{tpu_custom_call.1} parent=11 // pred_check_branch
          %291 = sbr.rel (%p289) target = $region32
        $region31: #{tpu_custom_call.1} parent=11 // pred_region
          %s293 = ssub.s32 8192, 8192
          %294 = vsyncadd [#allocation3], %s293
          %s295 = sshll.u32 [#allocation2], 4
          %s296 = int_to_ptr.vmem [resolvable:$true] %s295
          %301 = dma.hbm_to_vmem [thread:$0]  %s5, 8192, %s296, [#allocation3], 256, 256, 16
        $region32: #{tpu_custom_call.1} parent=11 // pred_fallthru
          _
        // Predicated region
        $region33: #{tpu_custom_call.1} parent=11 // pred_check
          %p302 = pneg %p173
        $region34: #{tpu_custom_call.1} parent=11 // pred_check_branch
          %304 = sbr.rel (%p302) target = $region36
        $region35: #{tpu_custom_call.1} parent=11 // pred_region
          %s306 = ssub.s32 8192, 8192
          %307 = vsyncadd [#allocation6], %s306
          %s308 = sshll.u32 [#allocation5], 4
          %s309 = int_to_ptr.vmem [resolvable:$true] %s308
          %314 = dma.hbm_to_vmem [thread:$0]  %s6, 8192, %s309, [#allocation6], 256, 256, 16
        $region36: #{tpu_custom_call.1} parent=11 // pred_fallthru
          _
        // Predicated region
        $region37: #{tpu_custom_call.1} parent=11 // pred_check
          %p315 = pneg %p194
        $region38: #{tpu_custom_call.1} parent=11 // pred_check_branch
          %317 = sbr.rel (%p315) target = $region40
        $region39: #{tpu_custom_call.1} parent=11 // pred_region
          _
        $region40: #{tpu_custom_call.1} parent=11 // pred_fallthru
          _
        // Predicated region
        $region41: #{tpu_custom_call.1} parent=11 // pred_check
          %p318 = pneg %p215
        $region42: #{tpu_custom_call.1} parent=11 // pred_check_branch
          %320 = sbr.rel (%p318) target = $region44
        $region43: #{tpu_custom_call.1} parent=11 // pred_region
          %s322 = ssub.s32 8192, 8192
          %323 = vsyncadd [#allocation6], %s322
          %s324 = sshll.u32 [#allocation7], 4
          %s325 = int_to_ptr.vmem [resolvable:$true] %s324
          %330 = dma.hbm_to_vmem [thread:$0]  %s8, 8192, %s325, [#allocation6], 128, 128, 8
        $region44: #{tpu_custom_call.1} parent=11 // pred_fallthru
          _
        // Predicated region
        $region45: #{tpu_custom_call.1} parent=11 // pred_check
          %p331 = pneg %p236
        $region46: #{tpu_custom_call.1} parent=11 // pred_check_branch
          %333 = sbr.rel (%p331) target = $region48
        $region47: #{tpu_custom_call.1} parent=11 // pred_region
          _
        $region48: #{tpu_custom_call.1} parent=11 // pred_fallthru
          _
      $region12: #{tpu_custom_call.1} parent=5 // pred_fallthru
        _
      %p334 = scmp.lt.s32.totalorder %s21, 2
      // Predicated region
      $region49: #{tpu_custom_call.1} parent=5 // pred_check
        %p335 = pneg %p334
      $region50: #{tpu_custom_call.1} parent=5 // pred_check_branch
        %337 = sbr.rel (%p335) target = $region52
      $region51: #{tpu_custom_call.1} parent=5 // pred_region
        // Predicated region
        $region53: #{tpu_custom_call.1} parent=51 // pred_check
          %p338 = pneg %p41
        $region54: #{tpu_custom_call.1} parent=51 // pred_check_branch
          %340 = sbr.rel (%p338) target = $region56
        $region55: #{tpu_custom_call.1} parent=51 // pred_region
          %p341 = scmp.lt.s32.totalorder %s21, 1
          %s342 = scalar_select %p341, %s21, 1
          %s343 = smul.addr %s342, 16
          %s344 = smul.addr %s343, 8
          %s345 = scalar_lea.vmem %s0, %s344
        $region56: #{tpu_custom_call.1} parent=51 // pred_fallthru
          _
      $region52: #{tpu_custom_call.1} parent=5 // pred_fallthru
        _
      %p346 = scmp.le.s32.totalorder 1, %s21
      %p347 = scmp.lt.s32.totalorder %s21, 3
      %p348 = pnand %p346, %p347
      %p349 = pneg %p348
      // Predicated region
      $region57: #{tpu_custom_call.1} parent=5 // pred_check
        _
      $region58: #{tpu_custom_call.1} parent=5 // pred_check_branch
        %351 = sbr.rel (%p348) target = $region60
      $region59: #{tpu_custom_call.1} parent=5 // pred_region
        %s352 = ssub.s32 %s21, 1
        // Predicated region
        $region61: #{tpu_custom_call.1} parent=59 // pred_check
          %p353 = pneg %p152
        $region62: #{tpu_custom_call.1} parent=59 // pred_check_branch
          %355 = sbr.rel (%p353) target = $region64
        $region63: #{tpu_custom_call.1} parent=59 // pred_region
          %356 = dma.done [#allocation3], 8192
        $region64: #{tpu_custom_call.1} parent=59 // pred_fallthru
          _
        // Predicated region
        $region65: #{tpu_custom_call.1} parent=59 // pred_check
          %p357 = pneg %p173
        $region66: #{tpu_custom_call.1} parent=59 // pred_check_branch
          %359 = sbr.rel (%p357) target = $region68
        $region67: #{tpu_custom_call.1} parent=59 // pred_region
          %360 = dma.done [#allocation6], 8192
        $region68: #{tpu_custom_call.1} parent=59 // pred_fallthru
          _
        // Predicated region
        $region69: #{tpu_custom_call.1} parent=59 // pred_check
          %p361 = pneg %p215
        $region70: #{tpu_custom_call.1} parent=59 // pred_check_branch
          %363 = sbr.rel (%p361) target = $region72
        $region71: #{tpu_custom_call.1} parent=59 // pred_region
          %364 = dma.done [#allocation6], 8192
        $region72: #{tpu_custom_call.1} parent=59 // pred_fallthru
          _
        %p365 = scmp.lt.s32.totalorder %s26, 1
        %s366 = scalar_select %p365, %s26, 1
        %s367 = smul.addr %s366, 16
        %s368 = smul.addr %s367, 8
        %s369 = scalar_lea.vmem %s0, %s368
        %p370 = pneg %p47
        %p371 = pneg %p44
        %p372 = pneg %p68
        %p373 = pneg %p65
        %p374 = pneg %p89
        %p375 = pneg %p86
        %p376 = pneg %p110
        %p377 = pneg %p107
        %p378 = pneg %p131
        %p379 = pneg %p128
        %p380 = pneg %p152
        %p381 = pneg %p149
        %p382 = pneg %p173
        %p383 = pneg %p170
        %p384 = pneg %p194
        %p385 = pneg %p191
        %p386 = pneg %p215
        %p387 = pneg %p212
        %p388 = pneg %p236
        %p389 = pneg %p233
        %p390 = pneg %p262
        %p391 = pneg %p259
        %s392 = sand.u32 %s249, 1
        %s393 = scalar_lea.sflag [#allocation4], %s392
        %s394 = sand.u32 %s249, 1
        %s395 = smul.addr %s394, 2
        %s396 = scalar_lea.vmem [#allocation8], %s395
        %p397 = scmp.lt.s32.totalorder %s26, 1
        %s398 = scalar_select %p397, %s26, 1
        %s399 = smul.addr %s398, 16
        %s400 = smul.addr %s399, 8
        %s401 = scalar_lea.vmem %s0, %s400
        %v403 = vld [vmem:[%s401] sm:$0xff]
        %v404 = vld [vmem:[%s401 + $0x8] sm:$0xff]
        %v405 = vld [vmem:[%s401 + $0x10] sm:$0xff]
        %v406 = vld [vmem:[%s401 + $0x18] sm:$0xff]
        %v407 = vld [vmem:[%s401 + $0x20] sm:$0xff]
        %v408 = vld [vmem:[%s401 + $0x28] sm:$0xff]
        %v409 = vld [vmem:[%s401 + $0x30] sm:$0xff]
        %v410 = vld [vmem:[%s401 + $0x38] sm:$0xff]
        %v411 = vld [vmem:[%s401 + $0x40] sm:$0xff]
        %v412 = vld [vmem:[%s401 + $0x48] sm:$0xff]
        %v413 = vld [vmem:[%s401 + $0x50] sm:$0xff]
        %v414 = vld [vmem:[%s401 + $0x58] sm:$0xff]
        %v415 = vld [vmem:[%s401 + $0x60] sm:$0xff]
        %v416 = vld [vmem:[%s401 + $0x68] sm:$0xff]
        %v417 = vld [vmem:[%s401 + $0x70] sm:$0xff]
        %v418 = vld [vmem:[%s401 + $0x78] sm:$0xff]
        %v419 = vld [vmem:[%s1] sm:$0x7]
        %v420 = vld [vmem:[%s2] sm:$0x1]
        %v422 = vlaneseq
        %v423 = vshrl.u32 %v422, 7
        %v424 = vsub.s32 0, %v423
        %v425 = vrot.slane %v420, %v424
        %vm427 = vcmask 23552
        %v429 = vsel %vm427, %v403, 0
        %v432 = vsel %vm427, %v404, 0
        %v435 = vsel %vm427, %v405, 0
        %v438 = vsel %vm427, %v406, 0
        %v441 = vsel %vm427, %v407, 0
        %v444 = vsel %vm427, %v408, 0
        %v447 = vsel %vm427, %v409, 0
        %v450 = vsel %vm427, %v410, 0
        %v453 = vsel %vm427, %v411, 0
        %v456 = vsel %vm427, %v412, 0
        %v459 = vsel %vm427, %v413, 0
        %v462 = vsel %vm427, %v414, 0
        %v465 = vsel %vm427, %v415, 0
        %v468 = vsel %vm427, %v416, 0
        %v471 = vsel %vm427, %v417, 0
        %v474 = vsel %vm427, %v418, 0
        %vm476 = vcmask 1042432
        %v478 = vsel %vm476, %v419, 0
        %480 = vmatprep.subr.mxu0 0.0
        %481 = vmatpush1.msra.mxu0 0.0
        %482 = vmatprep.subr.mxu0 0.0
        %483 = vmatpush1.msra.mxu0 0.0
        %484 = vmatprep.subr.mxu0 0.0
        %485 = vmatpush1.msra.mxu0 0.0
        %486 = vmatprep.subr.mxu0 0.0
        %487 = vmatpush1.msra.mxu0 0.0
        %488 = vmatprep.subr.mxu0 0.0
        %489 = vmatpush1.msra.mxu0 0.0
        %490 = vmatprep.subr.mxu0 0.0
        %491 = vmatpush1.msra.mxu0 0.0
        %492 = vmatprep.subr.mxu0 0.0
        %493 = vmatpush1.msra.mxu0 0.0
        %494 = vmatprep.subr.mxu0 0.0
        %495 = vmatpush1.msra.mxu0 0.0
        %496 = vmatprep.subr.mxu0 0.0
        %497 = vmatpush1.msra.mxu0 0.0
        %498 = vmatprep.subr.mxu0 0.0
        %499 = vmatpush1.msra.mxu0 0.0
        %500 = vmatprep.subr.mxu0 0.0
        %501 = vmatpush1.msra.mxu0 0.0
        %502 = vmatprep.subr.mxu0 0.0
        %503 = vmatpush1.msra.mxu0 0.0
        %504 = vmatprep.subr.mxu0 0.0
        %505 = vmatpush1.msra.mxu0 0.0
        %506 = vmatprep.subr.mxu0 0.0
        %507 = vmatpush1.msra.mxu0 0.0
        %508 = vmatprep.subr.mxu0 0.0
        %509 = vmatpush1.msra.mxu0 0.0
        %510 = vmatprep.subr.mxu0 0.0
        %511 = vmatpush1.msra.mxu0 %v478
        %512 = vmatprep.subr.mxu0 0.0
        %513 = vmatpush2.msra.mxu0 0.0
        %514 = vmatprep.subr.mxu0 0.0
        %515 = vmatpush2.msra.mxu0 0.0
        %516 = vmatprep.subr.mxu0 0.0
        %517 = vmatpush2.msra.mxu0 0.0
        %518 = vmatprep.subr.mxu0 0.0
        %519 = vmatpush2.msra.mxu0 0.0
        %520 = vmatprep.subr.mxu0 0.0
        %521 = vmatpush2.msra.mxu0 0.0
        %522 = vmatprep.subr.mxu0 0.0
        %523 = vmatpush2.msra.mxu0 0.0
        %524 = vmatprep.subr.mxu0 0.0
        %525 = vmatpush2.msra.mxu0 0.0
        %526 = vmatprep.subr.mxu0 0.0
        %527 = vmatpush2.msra.mxu0 0.0
        %528 = vmatprep.subr.mxu0 0.0
        %529 = vmatpush2.msra.mxu0 0.0
        %530 = vmatprep.subr.mxu0 0.0
        %531 = vmatpush2.msra.mxu0 0.0
        %532 = vmatprep.subr.mxu0 0.0
        %533 = vmatpush2.msra.mxu0 0.0
        %534 = vmatprep.subr.mxu0 0.0
        %535 = vmatpush2.msra.mxu0 0.0
        %536 = vmatprep.subr.mxu0 0.0
        %537 = vmatpush2.msra.mxu0 0.0
        %538 = vmatprep.subr.mxu0 0.0
        %539 = vmatpush2.msra.mxu0 0.0
        %540 = vmatprep.subr.mxu0 0.0
        %541 = vmatpush2.msra.mxu0 0.0
        %542 = vmatprep.subr.mxu0 0.0
        %543 = vmatpush2.msra.mxu0 0.0
        %544 = vmatprep.mubr.f32.mxu0 0.0
        %545 = vmatmul.mubr.f32.gmra.mxu0 %v429
        %v546 = vpop.f32.mrf.mxu0
        %v547 = vadd.f32 %v425, %v546
        %v548 = vpop.f32.mrf.mxu0
        %549 = vmatprep.mubr.f32.mxu0 0.0
        %550 = vmatmul.mubr.f32.gmra.mxu0 %v432
        %v551 = vpop.f32.mrf.mxu0
        %v552 = vadd.f32 %v425, %v551
        %v553 = vpop.f32.mrf.mxu0
        %554 = vmatprep.mubr.f32.mxu0 0.0
        %555 = vmatmul.mubr.f32.gmra.mxu0 %v435
        %v556 = vpop.f32.mrf.mxu0
        %v557 = vadd.f32 %v425, %v556
        %v558 = vpop.f32.mrf.mxu0
        %559 = vmatprep.mubr.f32.mxu0 0.0
        %560 = vmatmul.mubr.f32.gmra.mxu0 %v438
        %v561 = vpop.f32.mrf.mxu0
        %v562 = vadd.f32 %v425, %v561
        %v563 = vpop.f32.mrf.mxu0
        %564 = vmatprep.mubr.f32.mxu0 0.0
        %565 = vmatmul.mubr.f32.gmra.mxu0 %v441
        %v566 = vpop.f32.mrf.mxu0
        %v567 = vadd.f32 %v425, %v566
        %v568 = vpop.f32.mrf.mxu0
        %569 = vmatprep.mubr.f32.mxu0 0.0
        %570 = vmatmul.mubr.f32.gmra.mxu0 %v444
        %v571 = vpop.f32.mrf.mxu0
        %v572 = vadd.f32 %v425, %v571
        %v573 = vpop.f32.mrf.mxu0
        %574 = vmatprep.mubr.f32.mxu0 0.0
        %575 = vmatmul.mubr.f32.gmra.mxu0 %v447
        %v576 = vpop.f32.mrf.mxu0
        %v577 = vadd.f32 %v425, %v576
        %v578 = vpop.f32.mrf.mxu0
        %579 = vmatprep.mubr.f32.mxu0 0.0
        %580 = vmatmul.mubr.f32.gmra.mxu0 %v450
        %v581 = vpop.f32.mrf.mxu0
        %v582 = vadd.f32 %v425, %v581
        %v583 = vpop.f32.mrf.mxu0
        %584 = vmatprep.mubr.f32.mxu0 0.0
        %585 = vmatmul.mubr.f32.gmra.mxu0 %v453
        %v586 = vpop.f32.mrf.mxu0
        %v587 = vadd.f32 %v425, %v586
        %v588 = vpop.f32.mrf.mxu0
        %589 = vmatprep.mubr.f32.mxu0 0.0
        %590 = vmatmul.mubr.f32.gmra.mxu0 %v456
        %v591 = vpop.f32.mrf.mxu0
        %v592 = vadd.f32 %v425, %v591
        %v593 = vpop.f32.mrf.mxu0
        %594 = vmatprep.mubr.f32.mxu0 0.0
        %595 = vmatmul.mubr.f32.gmra.mxu0 %v459
        %v596 = vpop.f32.mrf.mxu0
        %v597 = vadd.f32 %v425, %v596
        %v598 = vpop.f32.mrf.mxu0
        %599 = vmatprep.mubr.f32.mxu0 0.0
        %600 = vmatmul.mubr.f32.gmra.mxu0 %v462
        %v601 = vpop.f32.mrf.mxu0
        %v602 = vadd.f32 %v425, %v601
        %v603 = vpop.f32.mrf.mxu0
        %604 = vmatprep.mubr.f32.mxu0 0.0
        %605 = vmatmul.mubr.f32.gmra.mxu0 %v465
        %v606 = vpop.f32.mrf.mxu0
        %v607 = vadd.f32 %v425, %v606
        %v608 = vpop.f32.mrf.mxu0
        %609 = vmatprep.mubr.f32.mxu0 0.0
        %610 = vmatmul.mubr.f32.gmra.mxu0 %v468
        %v611 = vpop.f32.mrf.mxu0
        %v612 = vadd.f32 %v425, %v611
        %v613 = vpop.f32.mrf.mxu0
        %614 = vmatprep.mubr.f32.mxu0 0.0
        %615 = vmatmul.mubr.f32.gmra.mxu0 %v471
        %v616 = vpop.f32.mrf.mxu0
        %v617 = vadd.f32 %v425, %v616
        %v618 = vpop.f32.mrf.mxu0
        %619 = vmatprep.mubr.f32.mxu0 0.0
        %620 = vmatmul.mubr.f32.gmra.mxu0 %v474
        %v621 = vpop.f32.mrf.mxu0
        %v622 = vadd.f32 %v425, %v621
        %v623 = vpop.f32.mrf.mxu0
        %624 = vdwg.mxu0
        %v625 = vmax.f32 %v547, 0.0
        %v626 = vmax.f32 %v552, 0.0
        %v627 = vmax.f32 %v557, 0.0
        %v628 = vmax.f32 %v562, 0.0
        %v629 = vmax.f32 %v567, 0.0
        %v630 = vmax.f32 %v572, 0.0
        %v631 = vmax.f32 %v577, 0.0
        %v632 = vmax.f32 %v582, 0.0
        %v633 = vmax.f32 %v587, 0.0
        %v634 = vmax.f32 %v592, 0.0
        %v635 = vmax.f32 %v597, 0.0
        %v636 = vmax.f32 %v602, 0.0
        %v637 = vmax.f32 %v607, 0.0
        %v638 = vmax.f32 %v612, 0.0
        %v639 = vmax.f32 %v617, 0.0
        %v640 = vmax.f32 %v622, 0.0
        %v641 = vpack.c.bf16 %v626, %v625
        %v642 = vpack.c.bf16 %v628, %v627
        %v643 = vpack.c.bf16 %v630, %v629
        %v644 = vpack.c.bf16 %v632, %v631
        %v645 = vpack.c.bf16 %v634, %v633
        %v646 = vpack.c.bf16 %v636, %v635
        %v647 = vpack.c.bf16 %v638, %v637
        %v648 = vpack.c.bf16 %v640, %v639
        %v649 = vld [vmem:[%s3] sm:$0xff]
        %v650 = vld [vmem:[%s3 + $0x8] sm:$0xff]
        %v651 = vld [vmem:[%s3 + $0x10] sm:$0xff]
        %v652 = vld [vmem:[%s3 + $0x18] sm:$0xff]
        %v653 = vld [vmem:[%s3 + $0x20] sm:$0xff]
        %v654 = vld [vmem:[%s3 + $0x28] sm:$0xff]
        %v655 = vld [vmem:[%s3 + $0x30] sm:$0xff]
        %v656 = vld [vmem:[%s3 + $0x38] sm:$0xff]
        %v657 = vld [vmem:[%s3 + $0x40] sm:$0xff]
        %v658 = vld [vmem:[%s3 + $0x48] sm:$0xff]
        %v659 = vld [vmem:[%s3 + $0x50] sm:$0xff]
        %v660 = vld [vmem:[%s3 + $0x58] sm:$0xff]
        %v661 = vld [vmem:[%s3 + $0x60] sm:$0xff]
        %v662 = vld [vmem:[%s3 + $0x68] sm:$0xff]
        %v663 = vld [vmem:[%s3 + $0x70] sm:$0xff]
        %v664 = vld [vmem:[%s3 + $0x78] sm:$0xff]
        %v665 = vld [vmem:[%s4] sm:$0x3]
        %v667 = vlaneseq
        %v668 = vshrl.u32 %v667, 7
        %v669 = vsub.s32 0, %v668
        %v670 = vrot.slane %v665, %v669
        %v671 = vlaneseq
        %v672 = vshrl.u32 %v671, 7
        %v673 = vsub.s32 1, %v672
        %v674 = vrot.slane %v665, %v673
        %v693 = vunpack.c.l.b16 %v649
        %v694 = vunpack.c.h.b16 %v649
        %v695 = vunpack.c.l.b16 %v650
        %v696 = vunpack.c.h.b16 %v650
        %v697 = vunpack.c.l.b16 %v651
        %v698 = vunpack.c.h.b16 %v651
        %v699 = vunpack.c.l.b16 %v652
        %v700 = vunpack.c.h.b16 %v652
        %v701 = vunpack.c.l.b16 %v653
        %v702 = vunpack.c.h.b16 %v653
        %v703 = vunpack.c.l.b16 %v654
        %v704 = vunpack.c.h.b16 %v654
        %v705 = vunpack.c.l.b16 %v655
        %v706 = vunpack.c.h.b16 %v655
        %v707 = vunpack.c.l.b16 %v656
        %v708 = vunpack.c.h.b16 %v656
        %v709 = vunpack.c.l.b16 %v657
        %v710 = vunpack.c.h.b16 %v657
        %v711 = vunpack.c.l.b16 %v658
        %v712 = vunpack.c.h.b16 %v658
        %v713 = vunpack.c.l.b16 %v659
        %v714 = vunpack.c.h.b16 %v659
        %v715 = vunpack.c.l.b16 %v660
        %v716 = vunpack.c.h.b16 %v660
        %v717 = vunpack.c.l.b16 %v661
        %v718 = vunpack.c.h.b16 %v661
        %v719 = vunpack.c.l.b16 %v662
        %v720 = vunpack.c.h.b16 %v662
        %v721 = vunpack.c.l.b16 %v663
        %v722 = vunpack.c.h.b16 %v663
        %v723 = vunpack.c.l.b16 %v664
        %v724 = vunpack.c.h.b16 %v664
        %v725 = vpack.c.b16 %v695, %v693
        %v726 = vpack.c.b16 %v696, %v694
        %v727 = vpack.c.b16 %v699, %v697
        %v728 = vpack.c.b16 %v700, %v698
        %v729 = vpack.c.b16 %v703, %v701
        %v730 = vpack.c.b16 %v704, %v702
        %v731 = vpack.c.b16 %v707, %v705
        %v732 = vpack.c.b16 %v708, %v706
        %v733 = vpack.c.b16 %v711, %v709
        %v734 = vpack.c.b16 %v712, %v710
        %v735 = vpack.c.b16 %v715, %v713
        %v736 = vpack.c.b16 %v716, %v714
        %v737 = vpack.c.b16 %v719, %v717
        %v738 = vpack.c.b16 %v720, %v718
        %v739 = vpack.c.b16 %v723, %v721
        %v740 = vpack.c.b16 %v724, %v722
        %757 = vmatprep.subr.bf16.mxu0 %v740
        %758 = vmatpush1.bf16.msra.mxu0 %v739
        %759 = vmatprep.subr.bf16.mxu0 %v738
        %760 = vmatpush1.bf16.msra.mxu0 %v737
        %761 = vmatprep.subr.bf16.mxu0 %v736
        %762 = vmatpush1.bf16.msra.mxu0 %v735
        %763 = vmatprep.subr.bf16.mxu0 %v734
        %764 = vmatpush1.bf16.msra.mxu0 %v733
        %765 = vmatprep.subr.bf16.mxu0 %v732
        %766 = vmatpush1.bf16.msra.mxu0 %v731
        %767 = vmatprep.subr.bf16.mxu0 %v730
        %768 = vmatpush1.bf16.msra.mxu0 %v729
        %769 = vmatprep.subr.bf16.mxu0 %v728
        %770 = vmatpush1.bf16.msra.mxu0 %v727
        %771 = vmatprep.subr.bf16.mxu0 %v726
        %772 = vmatpush1.bf16.msra.mxu0 %v725
        %773 = vmatprep.subr.bf16.mxu0 0
        %774 = vmatpush2.bf16.msra.mxu0 0
        %775 = vmatprep.subr.bf16.mxu0 0
        %776 = vmatpush2.bf16.msra.mxu0 0
        %777 = vmatprep.subr.bf16.mxu0 0
        %778 = vmatpush2.bf16.msra.mxu0 0
        %779 = vmatprep.subr.bf16.mxu0 0
        %780 = vmatpush2.bf16.msra.mxu0 0
        %781 = vmatprep.subr.bf16.mxu0 0
        %782 = vmatpush2.bf16.msra.mxu0 0
        %783 = vmatprep.subr.bf16.mxu0 0
        %784 = vmatpush2.bf16.msra.mxu0 0
        %785 = vmatprep.subr.bf16.mxu0 0
        %786 = vmatpush2.bf16.msra.mxu0 0
        %787 = vmatprep.subr.bf16.mxu0 0
        %788 = vmatpush2.bf16.msra.mxu0 0
        %789 = vmatprep.mubr.bf16.mxu0 0
        %790 = vmatmul.mubr.bf16.gmra.mxu0 %v641
        %v791 = vpop.f32.mrf.mxu0
        %v792 = vadd.f32 %v670, %v791
        %v793 = vpop.f32.mrf.mxu0
        %v794 = vadd.f32 %v674, %v793
        %v795 = vpop.f32.mrf.mxu0
        %v796 = vadd.f32 %v670, %v795
        %v797 = vpop.f32.mrf.mxu0
        %v798 = vadd.f32 %v674, %v797
        %799 = vmatprep.mubr.bf16.mxu0 0
        %800 = vmatmul.mubr.bf16.gmra.mxu0 %v642
        %v801 = vpop.f32.mrf.mxu0
        %v802 = vadd.f32 %v670, %v801
        %v803 = vpop.f32.mrf.mxu0
        %v804 = vadd.f32 %v674, %v803
        %v805 = vpop.f32.mrf.mxu0
        %v806 = vadd.f32 %v670, %v805
        %v807 = vpop.f32.mrf.mxu0
        %v808 = vadd.f32 %v674, %v807
        %809 = vmatprep.mubr.bf16.mxu0 0
        %810 = vmatmul.mubr.bf16.gmra.mxu0 %v643
        %v811 = vpop.f32.mrf.mxu0
        %v812 = vadd.f32 %v670, %v811
        %v813 = vpop.f32.mrf.mxu0
        %v814 = vadd.f32 %v674, %v813
        %v815 = vpop.f32.mrf.mxu0
        %v816 = vadd.f32 %v670, %v815
        %v817 = vpop.f32.mrf.mxu0
        %v818 = vadd.f32 %v674, %v817
        %819 = vmatprep.mubr.bf16.mxu0 0
        %820 = vmatmul.mubr.bf16.gmra.mxu0 %v644
        %v821 = vpop.f32.mrf.mxu0
        %v822 = vadd.f32 %v670, %v821
        %v823 = vpop.f32.mrf.mxu0
        %v824 = vadd.f32 %v674, %v823
        %v825 = vpop.f32.mrf.mxu0
        %v826 = vadd.f32 %v670, %v825
        %v827 = vpop.f32.mrf.mxu0
        %v828 = vadd.f32 %v674, %v827
        %829 = vmatprep.mubr.bf16.mxu0 0
        %830 = vmatmul.mubr.bf16.gmra.mxu0 %v645
        %v831 = vpop.f32.mrf.mxu0
        %v832 = vadd.f32 %v670, %v831
        %v833 = vpop.f32.mrf.mxu0
        %v834 = vadd.f32 %v674, %v833
        %v835 = vpop.f32.mrf.mxu0
        %v836 = vadd.f32 %v670, %v835
        %v837 = vpop.f32.mrf.mxu0
        %v838 = vadd.f32 %v674, %v837
        %839 = vmatprep.mubr.bf16.mxu0 0
        %840 = vmatmul.mubr.bf16.gmra.mxu0 %v646
        %v841 = vpop.f32.mrf.mxu0
        %v842 = vadd.f32 %v670, %v841
        %v843 = vpop.f32.mrf.mxu0
        %v844 = vadd.f32 %v674, %v843
        %v845 = vpop.f32.mrf.mxu0
        %v846 = vadd.f32 %v670, %v845
        %v847 = vpop.f32.mrf.mxu0
        %v848 = vadd.f32 %v674, %v847
        %849 = vmatprep.mubr.bf16.mxu0 0
        %850 = vmatmul.mubr.bf16.gmra.mxu0 %v647
        %v851 = vpop.f32.mrf.mxu0
        %v852 = vadd.f32 %v670, %v851
        %v853 = vpop.f32.mrf.mxu0
        %v854 = vadd.f32 %v674, %v853
        %v855 = vpop.f32.mrf.mxu0
        %v856 = vadd.f32 %v670, %v855
        %v857 = vpop.f32.mrf.mxu0
        %v858 = vadd.f32 %v674, %v857
        %859 = vmatprep.mubr.bf16.mxu0 0
        %860 = vmatmul.mubr.bf16.gmra.mxu0 %v648
        %v861 = vpop.f32.mrf.mxu0
        %v862 = vadd.f32 %v670, %v861
        %v863 = vpop.f32.mrf.mxu0
        %v864 = vadd.f32 %v674, %v863
        %v865 = vpop.f32.mrf.mxu0
        %v866 = vadd.f32 %v670, %v865
        %v867 = vpop.f32.mrf.mxu0
        %v868 = vadd.f32 %v674, %v867
        %869 = vdwg.mxu0
        %v870 = vmax.f32 %v792, %v802
        %v871 = vmax.f32 %v796, %v806
        %v872 = vmax.f32 %v870, %v812
        %v873 = vmax.f32 %v871, %v816
        %v874 = vmax.f32 %v872, %v822
        %v875 = vmax.f32 %v873, %v826
        %v876 = vmax.f32 %v874, %v832
        %v877 = vmax.f32 %v875, %v836
        %v878 = vmax.f32 %v876, %v842
        %v879 = vmax.f32 %v877, %v846
        %v880 = vmax.f32 %v878, %v852
        %v881 = vmax.f32 %v879, %v856
        %v882 = vmax.f32 %v880, %v862
        %v883 = vmax.f32 %v881, %v866
        %v884 = vmax.f32 %v882, %v883
        %v885 = vrot.slane %v884, 4
        %v886 = vmax.f32 %v884, %v885
        %v887 = vrot.slane %v886, 2
        %v888 = vmax.f32 %v886, %v887
        %v889 = vrot.slane %v888, 1
        %v890 = vmax.f32 %v888, %v889
        %v891 = vmax.f32 %v794, %v804
        %v892 = vmax.f32 %v798, %v808
        %v893 = vmax.f32 %v891, %v814
        %v894 = vmax.f32 %v892, %v818
        %v895 = vmax.f32 %v893, %v824
        %v896 = vmax.f32 %v894, %v828
        %v897 = vmax.f32 %v895, %v834
        %v898 = vmax.f32 %v896, %v838
        %v899 = vmax.f32 %v897, %v844
        %v900 = vmax.f32 %v898, %v848
        %v901 = vmax.f32 %v899, %v854
        %v902 = vmax.f32 %v900, %v858
        %v903 = vmax.f32 %v901, %v864
        %v904 = vmax.f32 %v902, %v868
        %v905 = vmax.f32 %v903, %v904
        %v906 = vrot.slane %v905, 4
        %v907 = vmax.f32 %v905, %v906
        %v908 = vrot.slane %v907, 2
        %v909 = vmax.f32 %v907, %v908
        %v910 = vrot.slane %v909, 1
        %v911 = vmax.f32 %v909, %v910
        %v912 = vpack.c.bf16 %v890, %v890
        %v913 = vpack.c.bf16 %v911, %v911
        %v914 = vld [vmem:[#allocation2] sm:$0xff]
        %v915 = vld [vmem:[#allocation2 + $0x8] sm:$0xff]
        %v916 = vld [vmem:[#allocation2 + $0x10] sm:$0xff]
        %v917 = vld [vmem:[#allocation2 + $0x18] sm:$0xff]
        %v918 = vld [vmem:[#allocation2 + $0x20] sm:$0xff]
        %v919 = vld [vmem:[#allocation2 + $0x28] sm:$0xff]
        %v920 = vld [vmem:[#allocation2 + $0x30] sm:$0xff]
        %v921 = vld [vmem:[#allocation2 + $0x38] sm:$0xff]
        %v922 = vld [vmem:[#allocation2 + $0x40] sm:$0xff]
        %v923 = vld [vmem:[#allocation2 + $0x48] sm:$0xff]
        %v924 = vld [vmem:[#allocation2 + $0x50] sm:$0xff]
        %v925 = vld [vmem:[#allocation2 + $0x58] sm:$0xff]
        %v926 = vld [vmem:[#allocation2 + $0x60] sm:$0xff]
        %v927 = vld [vmem:[#allocation2 + $0x68] sm:$0xff]
        %v928 = vld [vmem:[#allocation2 + $0x70] sm:$0xff]
        %v929 = vld [vmem:[#allocation2 + $0x78] sm:$0xff]
        %v930 = vld [vmem:[#allocation2 + $0x80] sm:$0xff]
        %v931 = vld [vmem:[#allocation2 + $0x88] sm:$0xff]
        %v932 = vld [vmem:[#allocation2 + $0x90] sm:$0xff]
        %v933 = vld [vmem:[#allocation2 + $0x98] sm:$0xff]
        %v934 = vld [vmem:[#allocation2 + $0xa0] sm:$0xff]
        %v935 = vld [vmem:[#allocation2 + $0xa8] sm:$0xff]
        %v936 = vld [vmem:[#allocation2 + $0xb0] sm:$0xff]
        %v937 = vld [vmem:[#allocation2 + $0xb8] sm:$0xff]
        %v938 = vld [vmem:[#allocation2 + $0xc0] sm:$0xff]
        %v939 = vld [vmem:[#allocation2 + $0xc8] sm:$0xff]
        %v940 = vld [vmem:[#allocation2 + $0xd0] sm:$0xff]
        %v941 = vld [vmem:[#allocation2 + $0xd8] sm:$0xff]
        %v942 = vld [vmem:[#allocation2 + $0xe0] sm:$0xff]
        %v943 = vld [vmem:[#allocation2 + $0xe8] sm:$0xff]
        %v944 = vld [vmem:[#allocation2 + $0xf0] sm:$0xff]
        %v945 = vld [vmem:[#allocation2 + $0xf8] sm:$0xff]
        %v946 = vld [vmem:[#allocation2 + $0x100] sm:$0xff]
        %v947 = vld [vmem:[#allocation2 + $0x108] sm:$0xff]
        %v948 = vld [vmem:[#allocation2 + $0x110] sm:$0xff]
        %v949 = vld [vmem:[#allocation2 + $0x118] sm:$0xff]
        %v950 = vld [vmem:[#allocation2 + $0x120] sm:$0xff]
        %v951 = vld [vmem:[#allocation2 + $0x128] sm:$0xff]
        %v952 = vld [vmem:[#allocation2 + $0x130] sm:$0xff]
        %v953 = vld [vmem:[#allocation2 + $0x138] sm:$0xff]
        %v954 = vld [vmem:[#allocation2 + $0x140] sm:$0xff]
        %v955 = vld [vmem:[#allocation2 + $0x148] sm:$0xff]
        %v956 = vld [vmem:[#allocation2 + $0x150] sm:$0xff]
        %v957 = vld [vmem:[#allocation2 + $0x158] sm:$0xff]
        %v958 = vld [vmem:[#allocation2 + $0x160] sm:$0xff]
        %v959 = vld [vmem:[#allocation2 + $0x168] sm:$0xff]
        %v960 = vld [vmem:[#allocation2 + $0x170] sm:$0xff]
        %v961 = vld [vmem:[#allocation2 + $0x178] sm:$0xff]
        %v962 = vld [vmem:[#allocation2 + $0x180] sm:$0xff]
        %v963 = vld [vmem:[#allocation2 + $0x188] sm:$0xff]
        %v964 = vld [vmem:[#allocation2 + $0x190] sm:$0xff]
        %v965 = vld [vmem:[#allocation2 + $0x198] sm:$0xff]
        %v966 = vld [vmem:[#allocation2 + $0x1a0] sm:$0xff]
        %v967 = vld [vmem:[#allocation2 + $0x1a8] sm:$0xff]
        %v968 = vld [vmem:[#allocation2 + $0x1b0] sm:$0xff]
        %v969 = vld [vmem:[#allocation2 + $0x1b8] sm:$0xff]
        %v970 = vld [vmem:[#allocation2 + $0x1c0] sm:$0xff]
        %v971 = vld [vmem:[#allocation2 + $0x1c8] sm:$0xff]
        %v972 = vld [vmem:[#allocation2 + $0x1d0] sm:$0xff]
        %v973 = vld [vmem:[#allocation2 + $0x1d8] sm:$0xff]
        %v974 = vld [vmem:[#allocation2 + $0x1e0] sm:$0xff]
        %v975 = vld [vmem:[#allocation2 + $0x1e8] sm:$0xff]
        %v976 = vld [vmem:[#allocation2 + $0x1f0] sm:$0xff]
        %v977 = vld [vmem:[#allocation2 + $0x1f8] sm:$0xff]
        %v1042 = vunpack.c.l.b16 %v914
        %v1043 = vunpack.c.h.b16 %v914
        %v1044 = vunpack.c.l.b16 %v915
        %v1045 = vunpack.c.h.b16 %v915
        %v1046 = vunpack.c.l.b16 %v916
        %v1047 = vunpack.c.h.b16 %v916
        %v1048 = vunpack.c.l.b16 %v917
        %v1049 = vunpack.c.h.b16 %v917
        %v1050 = vunpack.c.l.b16 %v918
        %v1051 = vunpack.c.h.b16 %v918
        %v1052 = vunpack.c.l.b16 %v919
        %v1053 = vunpack.c.h.b16 %v919
        %v1054 = vunpack.c.l.b16 %v920
        %v1055 = vunpack.c.h.b16 %v920
        %v1056 = vunpack.c.l.b16 %v921
        %v1057 = vunpack.c.h.b16 %v921
        %v1058 = vunpack.c.l.b16 %v922
        %v1059 = vunpack.c.h.b16 %v922
        %v1060 = vunpack.c.l.b16 %v923
        %v1061 = vunpack.c.h.b16 %v923
        %v1062 = vunpack.c.l.b16 %v924
        %v1063 = vunpack.c.h.b16 %v924
        %v1064 = vunpack.c.l.b16 %v925
        %v1065 = vunpack.c.h.b16 %v925
        %v1066 = vunpack.c.l.b16 %v926
        %v1067 = vunpack.c.h.b16 %v926
        %v1068 = vunpack.c.l.b16 %v927
        %v1069 = vunpack.c.h.b16 %v927
        %v1070 = vunpack.c.l.b16 %v928
        %v1071 = vunpack.c.h.b16 %v928
        %v1072 = vunpack.c.l.b16 %v929
        %v1073 = vunpack.c.h.b16 %v929
        %v1074 = vunpack.c.l.b16 %v930
        %v1075 = vunpack.c.h.b16 %v930
        %v1076 = vunpack.c.l.b16 %v931
        %v1077 = vunpack.c.h.b16 %v931
        %v1078 = vunpack.c.l.b16 %v932
        %v1079 = vunpack.c.h.b16 %v932
        %v1080 = vunpack.c.l.b16 %v933
        %v1081 = vunpack.c.h.b16 %v933
        %v1082 = vunpack.c.l.b16 %v934
        %v1083 = vunpack.c.h.b16 %v934
        %v1084 = vunpack.c.l.b16 %v935
        %v1085 = vunpack.c.h.b16 %v935
        %v1086 = vunpack.c.l.b16 %v936
        %v1087 = vunpack.c.h.b16 %v936
        %v1088 = vunpack.c.l.b16 %v937
        %v1089 = vunpack.c.h.b16 %v937
        %v1090 = vunpack.c.l.b16 %v938
        %v1091 = vunpack.c.h.b16 %v938
        %v1092 = vunpack.c.l.b16 %v939
        %v1093 = vunpack.c.h.b16 %v939
        %v1094 = vunpack.c.l.b16 %v940
        %v1095 = vunpack.c.h.b16 %v940
        %v1096 = vunpack.c.l.b16 %v941
        %v1097 = vunpack.c.h.b16 %v941
        %v1098 = vunpack.c.l.b16 %v942
        %v1099 = vunpack.c.h.b16 %v942
        %v1100 = vunpack.c.l.b16 %v943
        %v1101 = vunpack.c.h.b16 %v943
        %v1102 = vunpack.c.l.b16 %v944
        %v1103 = vunpack.c.h.b16 %v944
        %v1104 = vunpack.c.l.b16 %v945
        %v1105 = vunpack.c.h.b16 %v945
        %v1106 = vunpack.c.l.b16 %v946
        %v1107 = vunpack.c.h.b16 %v946
        %v1108 = vunpack.c.l.b16 %v947
        %v1109 = vunpack.c.h.b16 %v947
        %v1110 = vunpack.c.l.b16 %v948
        %v1111 = vunpack.c.h.b16 %v948
        %v1112 = vunpack.c.l.b16 %v949
        %v1113 = vunpack.c.h.b16 %v949
        %v1114 = vunpack.c.l.b16 %v950
        %v1115 = vunpack.c.h.b16 %v950
        %v1116 = vunpack.c.l.b16 %v951
        %v1117 = vunpack.c.h.b16 %v951
        %v1118 = vunpack.c.l.b16 %v952
        %v1119 = vunpack.c.h.b16 %v952
        %v1120 = vunpack.c.l.b16 %v953
        %v1121 = vunpack.c.h.b16 %v953
        %v1122 = vunpack.c.l.b16 %v954
        %v1123 = vunpack.c.h.b16 %v954
        %v1124 = vunpack.c.l.b16 %v955
        %v1125 = vunpack.c.h.b16 %v955
        %v1126 = vunpack.c.l.b16 %v956
        %v1127 = vunpack.c.h.b16 %v956
        %v1128 = vunpack.c.l.b16 %v957
        %v1129 = vunpack.c.h.b16 %v957
        %v1130 = vunpack.c.l.b16 %v958
        %v1131 = vunpack.c.h.b16 %v958
        %v1132 = vunpack.c.l.b16 %v959
        %v1133 = vunpack.c.h.b16 %v959
        %v1134 = vunpack.c.l.b16 %v960
        %v1135 = vunpack.c.h.b16 %v960
        %v1136 = vunpack.c.l.b16 %v961
        %v1137 = vunpack.c.h.b16 %v961
        %v1138 = vunpack.c.l.b16 %v962
        %v1139 = vunpack.c.h.b16 %v962
        %v1140 = vunpack.c.l.b16 %v963
        %v1141 = vunpack.c.h.b16 %v963
        %v1142 = vunpack.c.l.b16 %v964
        %v1143 = vunpack.c.h.b16 %v964
        %v1144 = vunpack.c.l.b16 %v965
        %v1145 = vunpack.c.h.b16 %v965
        %v1146 = vunpack.c.l.b16 %v966
        %v1147 = vunpack.c.h.b16 %v966
        %v1148 = vunpack.c.l.b16 %v967
        %v1149 = vunpack.c.h.b16 %v967
        %v1150 = vunpack.c.l.b16 %v968
        %v1151 = vunpack.c.h.b16 %v968
        %v1152 = vunpack.c.l.b16 %v969
        %v1153 = vunpack.c.h.b16 %v969
        %v1154 = vunpack.c.l.b16 %v970
        %v1155 = vunpack.c.h.b16 %v970
        %v1156 = vunpack.c.l.b16 %v971
        %v1157 = vunpack.c.h.b16 %v971
        %v1158 = vunpack.c.l.b16 %v972
        %v1159 = vunpack.c.h.b16 %v972
        %v1160 = vunpack.c.l.b16 %v973
        %v1161 = vunpack.c.h.b16 %v973
        %v1162 = vunpack.c.l.b16 %v974
        %v1163 = vunpack.c.h.b16 %v974
        %v1164 = vunpack.c.l.b16 %v975
        %v1165 = vunpack.c.h.b16 %v975
        %v1166 = vunpack.c.l.b16 %v976
        %v1167 = vunpack.c.h.b16 %v976
        %v1168 = vunpack.c.l.b16 %v977
        %v1169 = vunpack.c.h.b16 %v977
        %v1170 = vpack.c.b16 %v1046, %v1042
        %v1171 = vpack.c.b16 %v1047, %v1043
        %v1172 = vpack.c.b16 %v1048, %v1044
        %v1173 = vpack.c.b16 %v1049, %v1045
        %v1174 = vpack.c.b16 %v1054, %v1050
        %v1175 = vpack.c.b16 %v1055, %v1051
        %v1176 = vpack.c.b16 %v1056, %v1052
        %v1177 = vpack.c.b16 %v1057, %v1053
        %v1178 = vpack.c.b16 %v1062, %v1058
        %v1179 = vpack.c.b16 %v1063, %v1059
        %v1180 = vpack.c.b16 %v1064, %v1060
        %v1181 = vpack.c.b16 %v1065, %v1061
        %v1182 = vpack.c.b16 %v1070, %v1066
        %v1183 = vpack.c.b16 %v1071, %v1067
        %v1184 = vpack.c.b16 %v1072, %v1068
        %v1185 = vpack.c.b16 %v1073, %v1069
        %v1186 = vpack.c.b16 %v1078, %v1074
        %v1187 = vpack.c.b16 %v1079, %v1075
        %v1188 = vpack.c.b16 %v1080, %v1076
        %v1189 = vpack.c.b16 %v1081, %v1077
        %v1190 = vpack.c.b16 %v1086, %v1082
        %v1191 = vpack.c.b16 %v1087, %v1083
        %v1192 = vpack.c.b16 %v1088, %v1084
        %v1193 = vpack.c.b16 %v1089, %v1085
        %v1194 = vpack.c.b16 %v1094, %v1090
        %v1195 = vpack.c.b16 %v1095, %v1091
        %v1196 = vpack.c.b16 %v1096, %v1092
        %v1197 = vpack.c.b16 %v1097, %v1093
        %v1198 = vpack.c.b16 %v1102, %v1098
        %v1199 = vpack.c.b16 %v1103, %v1099
        %v1200 = vpack.c.b16 %v1104, %v1100
        %v1201 = vpack.c.b16 %v1105, %v1101
        %v1202 = vpack.c.b16 %v1110, %v1106
        %v1203 = vpack.c.b16 %v1111, %v1107
        %v1204 = vpack.c.b16 %v1112, %v1108
        %v1205 = vpack.c.b16 %v1113, %v1109
        %v1206 = vpack.c.b16 %v1118, %v1114
        %v1207 = vpack.c.b16 %v1119, %v1115
        %v1208 = vpack.c.b16 %v1120, %v1116
        %v1209 = vpack.c.b16 %v1121, %v1117
        %v1210 = vpack.c.b16 %v1126, %v1122
        %v1211 = vpack.c.b16 %v1127, %v1123
        %v1212 = vpack.c.b16 %v1128, %v1124
        %v1213 = vpack.c.b16 %v1129, %v1125
        %v1214 = vpack.c.b16 %v1134, %v1130
        %v1215 = vpack.c.b16 %v1135, %v1131
        %v1216 = vpack.c.b16 %v1136, %v1132
        %v1217 = vpack.c.b16 %v1137, %v1133
        %v1218 = vpack.c.b16 %v1142, %v1138
        %v1219 = vpack.c.b16 %v1143, %v1139
        %v1220 = vpack.c.b16 %v1144, %v1140
        %v1221 = vpack.c.b16 %v1145, %v1141
        %v1222 = vpack.c.b16 %v1150, %v1146
        %v1223 = vpack.c.b16 %v1151, %v1147
        %v1224 = vpack.c.b16 %v1152, %v1148
        %v1225 = vpack.c.b16 %v1153, %v1149
        %v1226 = vpack.c.b16 %v1158, %v1154
        %v1227 = vpack.c.b16 %v1159, %v1155
        %v1228 = vpack.c.b16 %v1160, %v1156
        %v1229 = vpack.c.b16 %v1161, %v1157
        %v1230 = vpack.c.b16 %v1166, %v1162
        %v1231 = vpack.c.b16 %v1167, %v1163
        %v1232 = vpack.c.b16 %v1168, %v1164
        %v1233 = vpack.c.b16 %v1169, %v1165
        %1298 = vmatprep.subr.bf16.mxu0 %v1199
        %1299 = vmatpush1.bf16.msra.mxu0 %v1198
        %1300 = vmatprep.subr.bf16.mxu0 %v1195
        %1301 = vmatpush1.bf16.msra.mxu0 %v1194
        %1302 = vmatprep.subr.bf16.mxu0 %v1191
        %1303 = vmatpush1.bf16.msra.mxu0 %v1190
        %1304 = vmatprep.subr.bf16.mxu0 %v1187
        %1305 = vmatpush1.bf16.msra.mxu0 %v1186
        %1306 = vmatprep.subr.bf16.mxu0 %v1183
        %1307 = vmatpush1.bf16.msra.mxu0 %v1182
        %1308 = vmatprep.subr.bf16.mxu0 %v1179
        %1309 = vmatpush1.bf16.msra.mxu0 %v1178
        %1310 = vmatprep.subr.bf16.mxu0 %v1175
        %1311 = vmatpush1.bf16.msra.mxu0 %v1174
        %1312 = vmatprep.subr.bf16.mxu0 %v1171
        %1313 = vmatpush1.bf16.msra.mxu0 %v1170
        %1314 = vmatprep.subr.bf16.mxu0 %v1231
        %1315 = vmatpush2.bf16.msra.mxu0 %v1230
        %1316 = vmatprep.subr.bf16.mxu0 %v1227
        %1317 = vmatpush2.bf16.msra.mxu0 %v1226
        %1318 = vmatprep.subr.bf16.mxu0 %v1223
        %1319 = vmatpush2.bf16.msra.mxu0 %v1222
        %1320 = vmatprep.subr.bf16.mxu0 %v1219
        %1321 = vmatpush2.bf16.msra.mxu0 %v1218
        %1322 = vmatprep.subr.bf16.mxu0 %v1215
        %1323 = vmatpush2.bf16.msra.mxu0 %v1214
        %1324 = vmatprep.subr.bf16.mxu0 %v1211
        %1325 = vmatpush2.bf16.msra.mxu0 %v1210
        %1326 = vmatprep.subr.bf16.mxu0 %v1207
        %1327 = vmatpush2.bf16.msra.mxu0 %v1206
        %1328 = vmatprep.subr.bf16.mxu0 %v1203
        %1329 = vmatpush2.bf16.msra.mxu0 %v1202
        %1330 = vmatprep.mubr.bf16.mxu0 %v913
        %1331 = vmatmul.mubr.bf16.gmra.mxu0 %v912
        %v1332 = vpop.f32.mrf.mxu0
        %v1333 = vadd.f32 0.0, %v1332
        %v1334 = vpop.f32.mrf.mxu0
        %v1335 = vadd.f32 0.0, %v1334
        %v1336 = vpop.f32.mrf.mxu0
        %v1337 = vpop.f32.mrf.mxu0
        %1338 = vdwg.mxu0
        %1339 = vmatprep.subr.bf16.mxu0 %v1201
        %1340 = vmatpush1.bf16.msra.mxu0 %v1200
        %1341 = vmatprep.subr.bf16.mxu0 %v1197
        %1342 = vmatpush1.bf16.msra.mxu0 %v1196
        %1343 = vmatprep.subr.bf16.mxu0 %v1193
        %1344 = vmatpush1.bf16.msra.mxu0 %v1192
        %1345 = vmatprep.subr.bf16.mxu0 %v1189
        %1346 = vmatpush1.bf16.msra.mxu0 %v1188
        %1347 = vmatprep.subr.bf16.mxu0 %v1185
        %1348 = vmatpush1.bf16.msra.mxu0 %v1184
        %1349 = vmatprep.subr.bf16.mxu0 %v1181
        %1350 = vmatpush1.bf16.msra.mxu0 %v1180
        %1351 = vmatprep.subr.bf16.mxu0 %v1177
        %1352 = vmatpush1.bf16.msra.mxu0 %v1176
        %1353 = vmatprep.subr.bf16.mxu0 %v1173
        %1354 = vmatpush1.bf16.msra.mxu0 %v1172
        %1355 = vmatprep.subr.bf16.mxu0 %v1233
        %1356 = vmatpush2.bf16.msra.mxu0 %v1232
        %1357 = vmatprep.subr.bf16.mxu0 %v1229
        %1358 = vmatpush2.bf16.msra.mxu0 %v1228
        %1359 = vmatprep.subr.bf16.mxu0 %v1225
        %1360 = vmatpush2.bf16.msra.mxu0 %v1224
        %1361 = vmatprep.subr.bf16.mxu0 %v1221
        %1362 = vmatpush2.bf16.msra.mxu0 %v1220
        %1363 = vmatprep.subr.bf16.mxu0 %v1217
        %1364 = vmatpush2.bf16.msra.mxu0 %v1216
        %1365 = vmatprep.subr.bf16.mxu0 %v1213
        %1366 = vmatpush2.bf16.msra.mxu0 %v1212
        %1367 = vmatprep.subr.bf16.mxu0 %v1209
        %1368 = vmatpush2.bf16.msra.mxu0 %v1208
        %1369 = vmatprep.subr.bf16.mxu0 %v1205
        %1370 = vmatpush2.bf16.msra.mxu0 %v1204
        %1371 = vmatprep.mubr.bf16.mxu0 %v913
        %1372 = vmatmul.mubr.bf16.gmra.mxu0 %v912
        %v1373 = vpop.f32.mrf.mxu0
        %v1374 = vadd.f32 0.0, %v1373
        %v1375 = vpop.f32.mrf.mxu0
        %v1376 = vadd.f32 0.0, %v1375
        %v1377 = vpop.f32.mrf.mxu0
        %v1378 = vpop.f32.mrf.mxu0
        %1379 = vdwg.mxu0
        %v1380 = vpack.c.bf16 %v796, %v792
        %v1381 = vpack.c.bf16 %v798, %v794
        %v1382 = vpack.c.bf16 %v806, %v802
        %v1383 = vpack.c.bf16 %v808, %v804
        %v1384 = vpack.c.bf16 %v816, %v812
        %v1385 = vpack.c.bf16 %v818, %v814
        %v1386 = vpack.c.bf16 %v826, %v822
        %v1387 = vpack.c.bf16 %v828, %v824
        %v1388 = vpack.c.bf16 %v836, %v832
        %v1389 = vpack.c.bf16 %v838, %v834
        %v1390 = vpack.c.bf16 %v846, %v842
        %v1391 = vpack.c.bf16 %v848, %v844
        %v1392 = vpack.c.bf16 %v856, %v852
        %v1393 = vpack.c.bf16 %v858, %v854
        %v1394 = vpack.c.bf16 %v866, %v862
        %v1395 = vpack.c.bf16 %v868, %v864
        %v1396 = vld [vmem:[#allocation5] sm:$0xff]
        %v1397 = vld [vmem:[#allocation5 + $0x8] sm:$0xff]
        %v1398 = vld [vmem:[#allocation5 + $0x10] sm:$0xff]
        %v1399 = vld [vmem:[#allocation5 + $0x18] sm:$0xff]
        %v1400 = vld [vmem:[#allocation5 + $0x20] sm:$0xff]
        %v1401 = vld [vmem:[#allocation5 + $0x28] sm:$0xff]
        %v1402 = vld [vmem:[#allocation5 + $0x30] sm:$0xff]
        %v1403 = vld [vmem:[#allocation5 + $0x38] sm:$0xff]
        %v1404 = vld [vmem:[#allocation5 + $0x40] sm:$0xff]
        %v1405 = vld [vmem:[#allocation5 + $0x48] sm:$0xff]
        %v1406 = vld [vmem:[#allocation5 + $0x50] sm:$0xff]
        %v1407 = vld [vmem:[#allocation5 + $0x58] sm:$0xff]
        %v1408 = vld [vmem:[#allocation5 + $0x60] sm:$0xff]
        %v1409 = vld [vmem:[#allocation5 + $0x68] sm:$0xff]
        %v1410 = vld [vmem:[#allocation5 + $0x70] sm:$0xff]
        %v1411 = vld [vmem:[#allocation5 + $0x78] sm:$0xff]
        %v1412 = vld [vmem:[#allocation5 + $0x80] sm:$0xff]
        %v1413 = vld [vmem:[#allocation5 + $0x88] sm:$0xff]
        %v1414 = vld [vmem:[#allocation5 + $0x90] sm:$0xff]
        %v1415 = vld [vmem:[#allocation5 + $0x98] sm:$0xff]
        %v1416 = vld [vmem:[#allocation5 + $0xa0] sm:$0xff]
        %v1417 = vld [vmem:[#allocation5 + $0xa8] sm:$0xff]
        %v1418 = vld [vmem:[#allocation5 + $0xb0] sm:$0xff]
        %v1419 = vld [vmem:[#allocation5 + $0xb8] sm:$0xff]
        %v1420 = vld [vmem:[#allocation5 + $0xc0] sm:$0xff]
        %v1421 = vld [vmem:[#allocation5 + $0xc8] sm:$0xff]
        %v1422 = vld [vmem:[#allocation5 + $0xd0] sm:$0xff]
        %v1423 = vld [vmem:[#allocation5 + $0xd8] sm:$0xff]
        %v1424 = vld [vmem:[#allocation5 + $0xe0] sm:$0xff]
        %v1425 = vld [vmem:[#allocation5 + $0xe8] sm:$0xff]
        %v1426 = vld [vmem:[#allocation5 + $0xf0] sm:$0xff]
        %v1427 = vld [vmem:[#allocation5 + $0xf8] sm:$0xff]
        %v1428 = vld [vmem:[#allocation5 + $0x100] sm:$0xff]
        %v1429 = vld [vmem:[#allocation5 + $0x108] sm:$0xff]
        %v1430 = vld [vmem:[#allocation5 + $0x110] sm:$0xff]
        %v1431 = vld [vmem:[#allocation5 + $0x118] sm:$0xff]
        %v1432 = vld [vmem:[#allocation5 + $0x120] sm:$0xff]
        %v1433 = vld [vmem:[#allocation5 + $0x128] sm:$0xff]
        %v1434 = vld [vmem:[#allocation5 + $0x130] sm:$0xff]
        %v1435 = vld [vmem:[#allocation5 + $0x138] sm:$0xff]
        %v1436 = vld [vmem:[#allocation5 + $0x140] sm:$0xff]
        %v1437 = vld [vmem:[#allocation5 + $0x148] sm:$0xff]
        %v1438 = vld [vmem:[#allocation5 + $0x150] sm:$0xff]
        %v1439 = vld [vmem:[#allocation5 + $0x158] sm:$0xff]
        %v1440 = vld [vmem:[#allocation5 + $0x160] sm:$0xff]
        %v1441 = vld [vmem:[#allocation5 + $0x168] sm:$0xff]
        %v1442 = vld [vmem:[#allocation5 + $0x170] sm:$0xff]
        %v1443 = vld [vmem:[#allocation5 + $0x178] sm:$0xff]
        %v1444 = vld [vmem:[#allocation5 + $0x180] sm:$0xff]
        %v1445 = vld [vmem:[#allocation5 + $0x188] sm:$0xff]
        %v1446 = vld [vmem:[#allocation5 + $0x190] sm:$0xff]
        %v1447 = vld [vmem:[#allocation5 + $0x198] sm:$0xff]
        %v1448 = vld [vmem:[#allocation5 + $0x1a0] sm:$0xff]
        %v1449 = vld [vmem:[#allocation5 + $0x1a8] sm:$0xff]
        %v1450 = vld [vmem:[#allocation5 + $0x1b0] sm:$0xff]
        %v1451 = vld [vmem:[#allocation5 + $0x1b8] sm:$0xff]
        %v1452 = vld [vmem:[#allocation5 + $0x1c0] sm:$0xff]
        %v1453 = vld [vmem:[#allocation5 + $0x1c8] sm:$0xff]
        %v1454 = vld [vmem:[#allocation5 + $0x1d0] sm:$0xff]
        %v1455 = vld [vmem:[#allocation5 + $0x1d8] sm:$0xff]
        %v1456 = vld [vmem:[#allocation5 + $0x1e0] sm:$0xff]
        %v1457 = vld [vmem:[#allocation5 + $0x1e8] sm:$0xff]
        %v1458 = vld [vmem:[#allocation5 + $0x1f0] sm:$0xff]
        %v1459 = vld [vmem:[#allocation5 + $0x1f8] sm:$0xff]
        %v1524 = vunpack.c.l.b16 %v1396
        %v1525 = vunpack.c.h.b16 %v1396
        %v1526 = vunpack.c.l.b16 %v1397
        %v1527 = vunpack.c.h.b16 %v1397
        %v1528 = vunpack.c.l.b16 %v1398
        %v1529 = vunpack.c.h.b16 %v1398
        %v1530 = vunpack.c.l.b16 %v1399
        %v1531 = vunpack.c.h.b16 %v1399
        %v1532 = vunpack.c.l.b16 %v1400
        %v1533 = vunpack.c.h.b16 %v1400
        %v1534 = vunpack.c.l.b16 %v1401
        %v1535 = vunpack.c.h.b16 %v1401
        %v1536 = vunpack.c.l.b16 %v1402
        %v1537 = vunpack.c.h.b16 %v1402
        %v1538 = vunpack.c.l.b16 %v1403
        %v1539 = vunpack.c.h.b16 %v1403
        %v1540 = vunpack.c.l.b16 %v1404
        %v1541 = vunpack.c.h.b16 %v1404
        %v1542 = vunpack.c.l.b16 %v1405
        %v1543 = vunpack.c.h.b16 %v1405
        %v1544 = vunpack.c.l.b16 %v1406
        %v1545 = vunpack.c.h.b16 %v1406
        %v1546 = vunpack.c.l.b16 %v1407
        %v1547 = vunpack.c.h.b16 %v1407
        %v1548 = vunpack.c.l.b16 %v1408
        %v1549 = vunpack.c.h.b16 %v1408
        %v1550 = vunpack.c.l.b16 %v1409
        %v1551 = vunpack.c.h.b16 %v1409
        %v1552 = vunpack.c.l.b16 %v1410
        %v1553 = vunpack.c.h.b16 %v1410
        %v1554 = vunpack.c.l.b16 %v1411
        %v1555 = vunpack.c.h.b16 %v1411
        %v1556 = vunpack.c.l.b16 %v1412
        %v1557 = vunpack.c.h.b16 %v1412
        %v1558 = vunpack.c.l.b16 %v1413
        %v1559 = vunpack.c.h.b16 %v1413
        %v1560 = vunpack.c.l.b16 %v1414
        %v1561 = vunpack.c.h.b16 %v1414
        %v1562 = vunpack.c.l.b16 %v1415
        %v1563 = vunpack.c.h.b16 %v1415
        %v1564 = vunpack.c.l.b16 %v1416
        %v1565 = vunpack.c.h.b16 %v1416
        %v1566 = vunpack.c.l.b16 %v1417
        %v1567 = vunpack.c.h.b16 %v1417
        %v1568 = vunpack.c.l.b16 %v1418
        %v1569 = vunpack.c.h.b16 %v1418
        %v1570 = vunpack.c.l.b16 %v1419
        %v1571 = vunpack.c.h.b16 %v1419
        %v1572 = vunpack.c.l.b16 %v1420
        %v1573 = vunpack.c.h.b16 %v1420
        %v1574 = vunpack.c.l.b16 %v1421
        %v1575 = vunpack.c.h.b16 %v1421
        %v1576 = vunpack.c.l.b16 %v1422
        %v1577 = vunpack.c.h.b16 %v1422
        %v1578 = vunpack.c.l.b16 %v1423
        %v1579 = vunpack.c.h.b16 %v1423
        %v1580 = vunpack.c.l.b16 %v1424
        %v1581 = vunpack.c.h.b16 %v1424
        %v1582 = vunpack.c.l.b16 %v1425
        %v1583 = vunpack.c.h.b16 %v1425
        %v1584 = vunpack.c.l.b16 %v1426
        %v1585 = vunpack.c.h.b16 %v1426
        %v1586 = vunpack.c.l.b16 %v1427
        %v1587 = vunpack.c.h.b16 %v1427
        %v1588 = vunpack.c.l.b16 %v1428
        %v1589 = vunpack.c.h.b16 %v1428
        %v1590 = vunpack.c.l.b16 %v1429
        %v1591 = vunpack.c.h.b16 %v1429
        %v1592 = vunpack.c.l.b16 %v1430
        %v1593 = vunpack.c.h.b16 %v1430
        %v1594 = vunpack.c.l.b16 %v1431
        %v1595 = vunpack.c.h.b16 %v1431
        %v1596 = vunpack.c.l.b16 %v1432
        %v1597 = vunpack.c.h.b16 %v1432
        %v1598 = vunpack.c.l.b16 %v1433
        %v1599 = vunpack.c.h.b16 %v1433
        %v1600 = vunpack.c.l.b16 %v1434
        %v1601 = vunpack.c.h.b16 %v1434
        %v1602 = vunpack.c.l.b16 %v1435
        %v1603 = vunpack.c.h.b16 %v1435
        %v1604 = vunpack.c.l.b16 %v1436
        %v1605 = vunpack.c.h.b16 %v1436
        %v1606 = vunpack.c.l.b16 %v1437
        %v1607 = vunpack.c.h.b16 %v1437
        %v1608 = vunpack.c.l.b16 %v1438
        %v1609 = vunpack.c.h.b16 %v1438
        %v1610 = vunpack.c.l.b16 %v1439
        %v1611 = vunpack.c.h.b16 %v1439
        %v1612 = vunpack.c.l.b16 %v1440
        %v1613 = vunpack.c.h.b16 %v1440
        %v1614 = vunpack.c.l.b16 %v1441
        %v1615 = vunpack.c.h.b16 %v1441
        %v1616 = vunpack.c.l.b16 %v1442
        %v1617 = vunpack.c.h.b16 %v1442
        %v1618 = vunpack.c.l.b16 %v1443
        %v1619 = vunpack.c.h.b16 %v1443
        %v1620 = vunpack.c.l.b16 %v1444
        %v1621 = vunpack.c.h.b16 %v1444
        %v1622 = vunpack.c.l.b16 %v1445
        %v1623 = vunpack.c.h.b16 %v1445
        %v1624 = vunpack.c.l.b16 %v1446
        %v1625 = vunpack.c.h.b16 %v1446
        %v1626 = vunpack.c.l.b16 %v1447
        %v1627 = vunpack.c.h.b16 %v1447
        %v1628 = vunpack.c.l.b16 %v1448
        %v1629 = vunpack.c.h.b16 %v1448
        %v1630 = vunpack.c.l.b16 %v1449
        %v1631 = vunpack.c.h.b16 %v1449
        %v1632 = vunpack.c.l.b16 %v1450
        %v1633 = vunpack.c.h.b16 %v1450
        %v1634 = vunpack.c.l.b16 %v1451
        %v1635 = vunpack.c.h.b16 %v1451
        %v1636 = vunpack.c.l.b16 %v1452
        %v1637 = vunpack.c.h.b16 %v1452
        %v1638 = vunpack.c.l.b16 %v1453
        %v1639 = vunpack.c.h.b16 %v1453
        %v1640 = vunpack.c.l.b16 %v1454
        %v1641 = vunpack.c.h.b16 %v1454
        %v1642 = vunpack.c.l.b16 %v1455
        %v1643 = vunpack.c.h.b16 %v1455
        %v1644 = vunpack.c.l.b16 %v1456
        %v1645 = vunpack.c.h.b16 %v1456
        %v1646 = vunpack.c.l.b16 %v1457
        %v1647 = vunpack.c.h.b16 %v1457
        %v1648 = vunpack.c.l.b16 %v1458
        %v1649 = vunpack.c.h.b16 %v1458
        %v1650 = vunpack.c.l.b16 %v1459
        %v1651 = vunpack.c.h.b16 %v1459
        %v1652 = vpack.c.b16 %v1528, %v1524
        %v1653 = vpack.c.b16 %v1529, %v1525
        %v1654 = vpack.c.b16 %v1530, %v1526
        %v1655 = vpack.c.b16 %v1531, %v1527
        %v1656 = vpack.c.b16 %v1536, %v1532
        %v1657 = vpack.c.b16 %v1537, %v1533
        %v1658 = vpack.c.b16 %v1538, %v1534
        %v1659 = vpack.c.b16 %v1539, %v1535
        %v1660 = vpack.c.b16 %v1544, %v1540
        %v1661 = vpack.c.b16 %v1545, %v1541
        %v1662 = vpack.c.b16 %v1546, %v1542
        %v1663 = vpack.c.b16 %v1547, %v1543
        %v1664 = vpack.c.b16 %v1552, %v1548
        %v1665 = vpack.c.b16 %v1553, %v1549
        %v1666 = vpack.c.b16 %v1554, %v1550
        %v1667 = vpack.c.b16 %v1555, %v1551
        %v1668 = vpack.c.b16 %v1560, %v1556
        %v1669 = vpack.c.b16 %v1561, %v1557
        %v1670 = vpack.c.b16 %v1562, %v1558
        %v1671 = vpack.c.b16 %v1563, %v1559
        %v1672 = vpack.c.b16 %v1568, %v1564
        %v1673 = vpack.c.b16 %v1569, %v1565
        %v1674 = vpack.c.b16 %v1570, %v1566
        %v1675 = vpack.c.b16 %v1571, %v1567
        %v1676 = vpack.c.b16 %v1576, %v1572
        %v1677 = vpack.c.b16 %v1577, %v1573
        %v1678 = vpack.c.b16 %v1578, %v1574
        %v1679 = vpack.c.b16 %v1579, %v1575
        %v1680 = vpack.c.b16 %v1584, %v1580
        %v1681 = vpack.c.b16 %v1585, %v1581
        %v1682 = vpack.c.b16 %v1586, %v1582
        %v1683 = vpack.c.b16 %v1587, %v1583
        %v1684 = vpack.c.b16 %v1592, %v1588
        %v1685 = vpack.c.b16 %v1593, %v1589
        %v1686 = vpack.c.b16 %v1594, %v1590
        %v1687 = vpack.c.b16 %v1595, %v1591
        %v1688 = vpack.c.b16 %v1600, %v1596
        %v1689 = vpack.c.b16 %v1601, %v1597
        %v1690 = vpack.c.b16 %v1602, %v1598
        %v1691 = vpack.c.b16 %v1603, %v1599
        %v1692 = vpack.c.b16 %v1608, %v1604
        %v1693 = vpack.c.b16 %v1609, %v1605
        %v1694 = vpack.c.b16 %v1610, %v1606
        %v1695 = vpack.c.b16 %v1611, %v1607
        %v1696 = vpack.c.b16 %v1616, %v1612
        %v1697 = vpack.c.b16 %v1617, %v1613
        %v1698 = vpack.c.b16 %v1618, %v1614
        %v1699 = vpack.c.b16 %v1619, %v1615
        %v1700 = vpack.c.b16 %v1624, %v1620
        %v1701 = vpack.c.b16 %v1625, %v1621
        %v1702 = vpack.c.b16 %v1626, %v1622
        %v1703 = vpack.c.b16 %v1627, %v1623
        %v1704 = vpack.c.b16 %v1632, %v1628
        %v1705 = vpack.c.b16 %v1633, %v1629
        %v1706 = vpack.c.b16 %v1634, %v1630
        %v1707 = vpack.c.b16 %v1635, %v1631
        %v1708 = vpack.c.b16 %v1640, %v1636
        %v1709 = vpack.c.b16 %v1641, %v1637
        %v1710 = vpack.c.b16 %v1642, %v1638
        %v1711 = vpack.c.b16 %v1643, %v1639
        %v1712 = vpack.c.b16 %v1648, %v1644
        %v1713 = vpack.c.b16 %v1649, %v1645
        %v1714 = vpack.c.b16 %v1650, %v1646
        %v1715 = vpack.c.b16 %v1651, %v1647
        %1780 = vmatprep.subr.bf16.mxu0 %v1681
        %1781 = vmatpush1.bf16.msra.mxu0 %v1680
        %1782 = vmatprep.subr.bf16.mxu0 %v1677
        %1783 = vmatpush1.bf16.msra.mxu0 %v1676
        %1784 = vmatprep.subr.bf16.mxu0 %v1673
        %1785 = vmatpush1.bf16.msra.mxu0 %v1672
        %1786 = vmatprep.subr.bf16.mxu0 %v1669
        %1787 = vmatpush1.bf16.msra.mxu0 %v1668
        %1788 = vmatprep.subr.bf16.mxu0 %v1665
        %1789 = vmatpush1.bf16.msra.mxu0 %v1664
        %1790 = vmatprep.subr.bf16.mxu0 %v1661
        %1791 = vmatpush1.bf16.msra.mxu0 %v1660
        %1792 = vmatprep.subr.bf16.mxu0 %v1657
        %1793 = vmatpush1.bf16.msra.mxu0 %v1656
        %1794 = vmatprep.subr.bf16.mxu0 %v1653
        %1795 = vmatpush1.bf16.msra.mxu0 %v1652
        %1796 = vmatprep.subr.bf16.mxu0 %v1713
        %1797 = vmatpush2.bf16.msra.mxu0 %v1712
        %1798 = vmatprep.subr.bf16.mxu0 %v1709
        %1799 = vmatpush2.bf16.msra.mxu0 %v1708
        %1800 = vmatprep.subr.bf16.mxu0 %v1705
        %1801 = vmatpush2.bf16.msra.mxu0 %v1704
        %1802 = vmatprep.subr.bf16.mxu0 %v1701
        %1803 = vmatpush2.bf16.msra.mxu0 %v1700
        %1804 = vmatprep.subr.bf16.mxu0 %v1697
        %1805 = vmatpush2.bf16.msra.mxu0 %v1696
        %1806 = vmatprep.subr.bf16.mxu0 %v1693
        %1807 = vmatpush2.bf16.msra.mxu0 %v1692
        %1808 = vmatprep.subr.bf16.mxu0 %v1689
        %1809 = vmatpush2.bf16.msra.mxu0 %v1688
        %1810 = vmatprep.subr.bf16.mxu0 %v1685
        %1811 = vmatpush2.bf16.msra.mxu0 %v1684
        %1812 = vmatprep.mubr.bf16.mxu0 %v1381
        %1813 = vmatmul.mubr.bf16.gmra.mxu0 %v1380
        %v1814 = vpop.f32.mrf.mxu0
        %v1815 = vadd.f32 0.0, %v1814
        %v1816 = vpop.f32.mrf.mxu0
        %v1817 = vadd.f32 0.0, %v1816
        %v1818 = vpop.f32.mrf.mxu0
        %v1819 = vadd.f32 0.0, %v1818
        %v1820 = vpop.f32.mrf.mxu0
        %v1821 = vadd.f32 0.0, %v1820
        %1822 = vmatprep.mubr.bf16.mxu0 %v1383
        %1823 = vmatmul.mubr.bf16.gmra.mxu0 %v1382
        %v1824 = vpop.f32.mrf.mxu0
        %v1825 = vadd.f32 0.0, %v1824
        %v1826 = vpop.f32.mrf.mxu0
        %v1827 = vadd.f32 0.0, %v1826
        %v1828 = vpop.f32.mrf.mxu0
        %v1829 = vadd.f32 0.0, %v1828
        %v1830 = vpop.f32.mrf.mxu0
        %v1831 = vadd.f32 0.0, %v1830
        %1832 = vmatprep.mubr.bf16.mxu0 %v1385
        %1833 = vmatmul.mubr.bf16.gmra.mxu0 %v1384
        %v1834 = vpop.f32.mrf.mxu0
        %v1835 = vadd.f32 0.0, %v1834
        %v1836 = vpop.f32.mrf.mxu0
        %v1837 = vadd.f32 0.0, %v1836
        %v1838 = vpop.f32.mrf.mxu0
        %v1839 = vadd.f32 0.0, %v1838
        %v1840 = vpop.f32.mrf.mxu0
        %v1841 = vadd.f32 0.0, %v1840
        %1842 = vmatprep.mubr.bf16.mxu0 %v1387
        %1843 = vmatmul.mubr.bf16.gmra.mxu0 %v1386
        %v1844 = vpop.f32.mrf.mxu0
        %v1845 = vadd.f32 0.0, %v1844
        %v1846 = vpop.f32.mrf.mxu0
        %v1847 = vadd.f32 0.0, %v1846
        %v1848 = vpop.f32.mrf.mxu0
        %v1849 = vadd.f32 0.0, %v1848
        %v1850 = vpop.f32.mrf.mxu0
        %v1851 = vadd.f32 0.0, %v1850
        %1852 = vmatprep.mubr.bf16.mxu0 %v1389
        %1853 = vmatmul.mubr.bf16.gmra.mxu0 %v1388
        %v1854 = vpop.f32.mrf.mxu0
        %v1855 = vadd.f32 0.0, %v1854
        %v1856 = vpop.f32.mrf.mxu0
        %v1857 = vadd.f32 0.0, %v1856
        %v1858 = vpop.f32.mrf.mxu0
        %v1859 = vadd.f32 0.0, %v1858
        %v1860 = vpop.f32.mrf.mxu0
        %v1861 = vadd.f32 0.0, %v1860
        %1862 = vmatprep.mubr.bf16.mxu0 %v1391
        %1863 = vmatmul.mubr.bf16.gmra.mxu0 %v1390
        %v1864 = vpop.f32.mrf.mxu0
        %v1865 = vadd.f32 0.0, %v1864
        %v1866 = vpop.f32.mrf.mxu0
        %v1867 = vadd.f32 0.0, %v1866
        %v1868 = vpop.f32.mrf.mxu0
        %v1869 = vadd.f32 0.0, %v1868
        %v1870 = vpop.f32.mrf.mxu0
        %v1871 = vadd.f32 0.0, %v1870
        %1872 = vmatprep.mubr.bf16.mxu0 %v1393
        %1873 = vmatmul.mubr.bf16.gmra.mxu0 %v1392
        %v1874 = vpop.f32.mrf.mxu0
        %v1875 = vadd.f32 0.0, %v1874
        %v1876 = vpop.f32.mrf.mxu0
        %v1877 = vadd.f32 0.0, %v1876
        %v1878 = vpop.f32.mrf.mxu0
        %v1879 = vadd.f32 0.0, %v1878
        %v1880 = vpop.f32.mrf.mxu0
        %v1881 = vadd.f32 0.0, %v1880
        %1882 = vmatprep.mubr.bf16.mxu0 %v1395
        %1883 = vmatmul.mubr.bf16.gmra.mxu0 %v1394
        %v1884 = vpop.f32.mrf.mxu0
        %v1885 = vadd.f32 0.0, %v1884
        %v1886 = vpop.f32.mrf.mxu0
        %v1887 = vadd.f32 0.0, %v1886
        %v1888 = vpop.f32.mrf.mxu0
        %v1889 = vadd.f32 0.0, %v1888
        %v1890 = vpop.f32.mrf.mxu0
        %v1891 = vadd.f32 0.0, %v1890
        %1892 = vdwg.mxu0
        %1893 = vmatprep.subr.bf16.mxu0 %v1683
        %1894 = vmatpush1.bf16.msra.mxu0 %v1682
        %1895 = vmatprep.subr.bf16.mxu0 %v1679
        %1896 = vmatpush1.bf16.msra.mxu0 %v1678
        %1897 = vmatprep.subr.bf16.mxu0 %v1675
        %1898 = vmatpush1.bf16.msra.mxu0 %v1674
        %1899 = vmatprep.subr.bf16.mxu0 %v1671
        %1900 = vmatpush1.bf16.msra.mxu0 %v1670
        %1901 = vmatprep.subr.bf16.mxu0 %v1667
        %1902 = vmatpush1.bf16.msra.mxu0 %v1666
        %1903 = vmatprep.subr.bf16.mxu0 %v1663
        %1904 = vmatpush1.bf16.msra.mxu0 %v1662
        %1905 = vmatprep.subr.bf16.mxu0 %v1659
        %1906 = vmatpush1.bf16.msra.mxu0 %v1658
        %1907 = vmatprep.subr.bf16.mxu0 %v1655
        %1908 = vmatpush1.bf16.msra.mxu0 %v1654
        %1909 = vmatprep.subr.bf16.mxu0 %v1715
        %1910 = vmatpush2.bf16.msra.mxu0 %v1714
        %1911 = vmatprep.subr.bf16.mxu0 %v1711
        %1912 = vmatpush2.bf16.msra.mxu0 %v1710
        %1913 = vmatprep.subr.bf16.mxu0 %v1707
        %1914 = vmatpush2.bf16.msra.mxu0 %v1706
        %1915 = vmatprep.subr.bf16.mxu0 %v1703
        %1916 = vmatpush2.bf16.msra.mxu0 %v1702
        %1917 = vmatprep.subr.bf16.mxu0 %v1699
        %1918 = vmatpush2.bf16.msra.mxu0 %v1698
        %1919 = vmatprep.subr.bf16.mxu0 %v1695
        %1920 = vmatpush2.bf16.msra.mxu0 %v1694
        %1921 = vmatprep.subr.bf16.mxu0 %v1691
        %1922 = vmatpush2.bf16.msra.mxu0 %v1690
        %1923 = vmatprep.subr.bf16.mxu0 %v1687
        %1924 = vmatpush2.bf16.msra.mxu0 %v1686
        %1925 = vmatprep.mubr.bf16.mxu0 %v1381
        %1926 = vmatmul.mubr.bf16.gmra.mxu0 %v1380
        %v1927 = vpop.f32.mrf.mxu0
        %v1928 = vadd.f32 0.0, %v1927
        %v1929 = vpop.f32.mrf.mxu0
        %v1930 = vadd.f32 0.0, %v1929
        %v1931 = vpop.f32.mrf.mxu0
        %v1932 = vadd.f32 0.0, %v1931
        %v1933 = vpop.f32.mrf.mxu0
        %v1934 = vadd.f32 0.0, %v1933
        %1935 = vmatprep.mubr.bf16.mxu0 %v1383
        %1936 = vmatmul.mubr.bf16.gmra.mxu0 %v1382
        %v1937 = vpop.f32.mrf.mxu0
        %v1938 = vadd.f32 0.0, %v1937
        %v1939 = vpop.f32.mrf.mxu0
        %v1940 = vadd.f32 0.0, %v1939
        %v1941 = vpop.f32.mrf.mxu0
        %v1942 = vadd.f32 0.0, %v1941
        %v1943 = vpop.f32.mrf.mxu0
        %v1944 = vadd.f32 0.0, %v1943
        %1945 = vmatprep.mubr.bf16.mxu0 %v1385
        %1946 = vmatmul.mubr.bf16.gmra.mxu0 %v1384
        %v1947 = vpop.f32.mrf.mxu0
        %v1948 = vadd.f32 0.0, %v1947
        %v1949 = vpop.f32.mrf.mxu0
        %v1950 = vadd.f32 0.0, %v1949
        %v1951 = vpop.f32.mrf.mxu0
        %v1952 = vadd.f32 0.0, %v1951
        %v1953 = vpop.f32.mrf.mxu0
        %v1954 = vadd.f32 0.0, %v1953
        %1955 = vmatprep.mubr.bf16.mxu0 %v1387
        %1956 = vmatmul.mubr.bf16.gmra.mxu0 %v1386
        %v1957 = vpop.f32.mrf.mxu0
        %v1958 = vadd.f32 0.0, %v1957
        %v1959 = vpop.f32.mrf.mxu0
        %v1960 = vadd.f32 0.0, %v1959
        %v1961 = vpop.f32.mrf.mxu0
        %v1962 = vadd.f32 0.0, %v1961
        %v1963 = vpop.f32.mrf.mxu0
        %v1964 = vadd.f32 0.0, %v1963
        %1965 = vmatprep.mubr.bf16.mxu0 %v1389
        %1966 = vmatmul.mubr.bf16.gmra.mxu0 %v1388
        %v1967 = vpop.f32.mrf.mxu0
        %v1968 = vadd.f32 0.0, %v1967
        %v1969 = vpop.f32.mrf.mxu0
        %v1970 = vadd.f32 0.0, %v1969
        %v1971 = vpop.f32.mrf.mxu0
        %v1972 = vadd.f32 0.0, %v1971
        %v1973 = vpop.f32.mrf.mxu0
        %v1974 = vadd.f32 0.0, %v1973
        %1975 = vmatprep.mubr.bf16.mxu0 %v1391
        %1976 = vmatmul.mubr.bf16.gmra.mxu0 %v1390
        %v1977 = vpop.f32.mrf.mxu0
        %v1978 = vadd.f32 0.0, %v1977
        %v1979 = vpop.f32.mrf.mxu0
        %v1980 = vadd.f32 0.0, %v1979
        %v1981 = vpop.f32.mrf.mxu0
        %v1982 = vadd.f32 0.0, %v1981
        %v1983 = vpop.f32.mrf.mxu0
        %v1984 = vadd.f32 0.0, %v1983
        %1985 = vmatprep.mubr.bf16.mxu0 %v1393
        %1986 = vmatmul.mubr.bf16.gmra.mxu0 %v1392
        %v1987 = vpop.f32.mrf.mxu0
        %v1988 = vadd.f32 0.0, %v1987
        %v1989 = vpop.f32.mrf.mxu0
        %v1990 = vadd.f32 0.0, %v1989
        %v1991 = vpop.f32.mrf.mxu0
        %v1992 = vadd.f32 0.0, %v1991
        %v1993 = vpop.f32.mrf.mxu0
        %v1994 = vadd.f32 0.0, %v1993
        %1995 = vmatprep.mubr.bf16.mxu0 %v1395
        %1996 = vmatmul.mubr.bf16.gmra.mxu0 %v1394
        %v1997 = vpop.f32.mrf.mxu0
        %v1998 = vadd.f32 0.0, %v1997
        %v1999 = vpop.f32.mrf.mxu0
        %v2000 = vadd.f32 0.0, %v1999
        %v2001 = vpop.f32.mrf.mxu0
        %v2002 = vadd.f32 0.0, %v2001
        %v2003 = vpop.f32.mrf.mxu0
        %v2004 = vadd.f32 0.0, %v2003
        %2005 = vdwg.mxu0
        %v2006 = vlaneseq
        %v2007 = vshrl.u32 %v2006, 7
        %v2008 = vsub.s32 0, %v2007
        %v2009 = vrot.slane %v1333, %v2008
        %v2010 = vlaneseq
        %v2011 = vshrl.u32 %v2010, 7
        %v2012 = vsub.s32 0, %v2011
        %v2013 = vrot.slane %v1335, %v2012
        %v2014 = vlaneseq
        %v2015 = vshrl.u32 %v2014, 7
        %v2016 = vsub.s32 0, %v2015
        %v2017 = vrot.slane %v1374, %v2016
        %v2018 = vlaneseq
        %v2019 = vshrl.u32 %v2018, 7
        %v2020 = vsub.s32 0, %v2019
        %v2021 = vrot.slane %v1376, %v2020
        %v2022 = vadd.f32 %v1815, %v2009
        %v2023 = vadd.f32 %v1817, %v2013
        %v2024 = vadd.f32 %v1928, %v2017
        %v2025 = vadd.f32 %v1930, %v2021
        %v2026 = vadd.f32 %v1819, %v2009
        %v2027 = vadd.f32 %v1821, %v2013
        %v2028 = vadd.f32 %v1932, %v2017
        %v2029 = vadd.f32 %v1934, %v2021
        %v2030 = vadd.f32 %v1825, %v2009
        %v2031 = vadd.f32 %v1827, %v2013
        %v2032 = vadd.f32 %v1938, %v2017
        %v2033 = vadd.f32 %v1940, %v2021
        %v2034 = vadd.f32 %v1829, %v2009
        %v2035 = vadd.f32 %v1831, %v2013
        %v2036 = vadd.f32 %v1942, %v2017
        %v2037 = vadd.f32 %v1944, %v2021
        %v2038 = vadd.f32 %v1835, %v2009
        %v2039 = vadd.f32 %v1837, %v2013
        %v2040 = vadd.f32 %v1948, %v2017
        %v2041 = vadd.f32 %v1950, %v2021
        %v2042 = vadd.f32 %v1839, %v2009
        %v2043 = vadd.f32 %v1841, %v2013
        %v2044 = vadd.f32 %v1952, %v2017
        %v2045 = vadd.f32 %v1954, %v2021
        %v2046 = vadd.f32 %v1845, %v2009
        %v2047 = vadd.f32 %v1847, %v2013
        %v2048 = vadd.f32 %v1958, %v2017
        %v2049 = vadd.f32 %v1960, %v2021
        %v2050 = vadd.f32 %v1849, %v2009
        %v2051 = vadd.f32 %v1851, %v2013
        %v2052 = vadd.f32 %v1962, %v2017
        %v2053 = vadd.f32 %v1964, %v2021
        %v2054 = vadd.f32 %v1855, %v2009
        %v2055 = vadd.f32 %v1857, %v2013
        %v2056 = vadd.f32 %v1968, %v2017
        %v2057 = vadd.f32 %v1970, %v2021
        %v2058 = vadd.f32 %v1859, %v2009
        %v2059 = vadd.f32 %v1861, %v2013
        %v2060 = vadd.f32 %v1972, %v2017
        %v2061 = vadd.f32 %v1974, %v2021
        %v2062 = vadd.f32 %v1865, %v2009
        %v2063 = vadd.f32 %v1867, %v2013
        %v2064 = vadd.f32 %v1978, %v2017
        %v2065 = vadd.f32 %v1980, %v2021
        %v2066 = vadd.f32 %v1869, %v2009
        %v2067 = vadd.f32 %v1871, %v2013
        %v2068 = vadd.f32 %v1982, %v2017
        %v2069 = vadd.f32 %v1984, %v2021
        %v2070 = vadd.f32 %v1875, %v2009
        %v2071 = vadd.f32 %v1877, %v2013
        %v2072 = vadd.f32 %v1988, %v2017
        %v2073 = vadd.f32 %v1990, %v2021
        %v2074 = vadd.f32 %v1879, %v2009
        %v2075 = vadd.f32 %v1881, %v2013
        %v2076 = vadd.f32 %v1992, %v2017
        %v2077 = vadd.f32 %v1994, %v2021
        %v2078 = vadd.f32 %v1885, %v2009
        %v2079 = vadd.f32 %v1887, %v2013
        %v2080 = vadd.f32 %v1998, %v2017
        %v2081 = vadd.f32 %v2000, %v2021
        %v2082 = vadd.f32 %v1889, %v2009
        %v2083 = vadd.f32 %v1891, %v2013
        %v2084 = vadd.f32 %v2002, %v2017
        %v2085 = vadd.f32 %v2004, %v2021
        %v2086 = vld [vmem:[%s7] sm:$0xf]
        %v2088 = vlaneseq
        %v2089 = vshrl.u32 %v2088, 7
        %v2090 = vsub.s32 0, %v2089
        %v2091 = vrot.slane %v2086, %v2090
        %v2092 = vlaneseq
        %v2093 = vshrl.u32 %v2092, 7
        %v2094 = vsub.s32 1, %v2093
        %v2095 = vrot.slane %v2086, %v2094
        %v2096 = vlaneseq
        %v2097 = vshrl.u32 %v2096, 7
        %v2098 = vsub.s32 2, %v2097
        %v2099 = vrot.slane %v2086, %v2098
        %v2100 = vlaneseq
        %v2101 = vshrl.u32 %v2100, 7
        %v2102 = vsub.s32 3, %v2101
        %v2103 = vrot.slane %v2086, %v2102
        %v2108 = vadd.f32 %v2022, %v2091
        %v2109 = vadd.f32 %v2023, %v2095
        %v2110 = vadd.f32 %v2024, %v2099
        %v2111 = vadd.f32 %v2025, %v2103
        %v2112 = vadd.f32 %v2026, %v2091
        %v2113 = vadd.f32 %v2027, %v2095
        %v2114 = vadd.f32 %v2028, %v2099
        %v2115 = vadd.f32 %v2029, %v2103
        %v2116 = vadd.f32 %v2030, %v2091
        %v2117 = vadd.f32 %v2031, %v2095
        %v2118 = vadd.f32 %v2032, %v2099
        %v2119 = vadd.f32 %v2033, %v2103
        %v2120 = vadd.f32 %v2034, %v2091
        %v2121 = vadd.f32 %v2035, %v2095
        %v2122 = vadd.f32 %v2036, %v2099
        %v2123 = vadd.f32 %v2037, %v2103
        %v2124 = vadd.f32 %v2038, %v2091
        %v2125 = vadd.f32 %v2039, %v2095
        %v2126 = vadd.f32 %v2040, %v2099
        %v2127 = vadd.f32 %v2041, %v2103
        %v2128 = vadd.f32 %v2042, %v2091
        %v2129 = vadd.f32 %v2043, %v2095
        %v2130 = vadd.f32 %v2044, %v2099
        %v2131 = vadd.f32 %v2045, %v2103
        %v2132 = vadd.f32 %v2046, %v2091
        %v2133 = vadd.f32 %v2047, %v2095
        %v2134 = vadd.f32 %v2048, %v2099
        %v2135 = vadd.f32 %v2049, %v2103
        %v2136 = vadd.f32 %v2050, %v2091
        %v2137 = vadd.f32 %v2051, %v2095
        %v2138 = vadd.f32 %v2052, %v2099
        %v2139 = vadd.f32 %v2053, %v2103
        %v2140 = vadd.f32 %v2054, %v2091
        %v2141 = vadd.f32 %v2055, %v2095
        %v2142 = vadd.f32 %v2056, %v2099
        %v2143 = vadd.f32 %v2057, %v2103
        %v2144 = vadd.f32 %v2058, %v2091
        %v2145 = vadd.f32 %v2059, %v2095
        %v2146 = vadd.f32 %v2060, %v2099
        %v2147 = vadd.f32 %v2061, %v2103
        %v2148 = vadd.f32 %v2062, %v2091
        %v2149 = vadd.f32 %v2063, %v2095
        %v2150 = vadd.f32 %v2064, %v2099
        %v2151 = vadd.f32 %v2065, %v2103
        %v2152 = vadd.f32 %v2066, %v2091
        %v2153 = vadd.f32 %v2067, %v2095
        %v2154 = vadd.f32 %v2068, %v2099
        %v2155 = vadd.f32 %v2069, %v2103
        %v2156 = vadd.f32 %v2070, %v2091
        %v2157 = vadd.f32 %v2071, %v2095
        %v2158 = vadd.f32 %v2072, %v2099
        %v2159 = vadd.f32 %v2073, %v2103
        %v2160 = vadd.f32 %v2074, %v2091
        %v2161 = vadd.f32 %v2075, %v2095
        %v2162 = vadd.f32 %v2076, %v2099
        %v2163 = vadd.f32 %v2077, %v2103
        %v2164 = vadd.f32 %v2078, %v2091
        %v2165 = vadd.f32 %v2079, %v2095
        %v2166 = vadd.f32 %v2080, %v2099
        %v2167 = vadd.f32 %v2081, %v2103
        %v2168 = vadd.f32 %v2082, %v2091
        %v2169 = vadd.f32 %v2083, %v2095
        %v2170 = vadd.f32 %v2084, %v2099
        %v2171 = vadd.f32 %v2085, %v2103
        %v2172 = vmax.f32 %v2108, 0.0
        %v2173 = vmax.f32 %v2109, 0.0
        %v2174 = vmax.f32 %v2110, 0.0
        %v2175 = vmax.f32 %v2111, 0.0
        %v2176 = vmax.f32 %v2112, 0.0
        %v2177 = vmax.f32 %v2113, 0.0
        %v2178 = vmax.f32 %v2114, 0.0
        %v2179 = vmax.f32 %v2115, 0.0
        %v2180 = vmax.f32 %v2116, 0.0
        %v2181 = vmax.f32 %v2117, 0.0
        %v2182 = vmax.f32 %v2118, 0.0
        %v2183 = vmax.f32 %v2119, 0.0
        %v2184 = vmax.f32 %v2120, 0.0
        %v2185 = vmax.f32 %v2121, 0.0
        %v2186 = vmax.f32 %v2122, 0.0
        %v2187 = vmax.f32 %v2123, 0.0
        %v2188 = vmax.f32 %v2124, 0.0
        %v2189 = vmax.f32 %v2125, 0.0
        %v2190 = vmax.f32 %v2126, 0.0
        %v2191 = vmax.f32 %v2127, 0.0
        %v2192 = vmax.f32 %v2128, 0.0
        %v2193 = vmax.f32 %v2129, 0.0
        %v2194 = vmax.f32 %v2130, 0.0
        %v2195 = vmax.f32 %v2131, 0.0
        %v2196 = vmax.f32 %v2132, 0.0
        %v2197 = vmax.f32 %v2133, 0.0
        %v2198 = vmax.f32 %v2134, 0.0
        %v2199 = vmax.f32 %v2135, 0.0
        %v2200 = vmax.f32 %v2136, 0.0
        %v2201 = vmax.f32 %v2137, 0.0
        %v2202 = vmax.f32 %v2138, 0.0
        %v2203 = vmax.f32 %v2139, 0.0
        %v2204 = vmax.f32 %v2140, 0.0
        %v2205 = vmax.f32 %v2141, 0.0
        %v2206 = vmax.f32 %v2142, 0.0
        %v2207 = vmax.f32 %v2143, 0.0
        %v2208 = vmax.f32 %v2144, 0.0
        %v2209 = vmax.f32 %v2145, 0.0
        %v2210 = vmax.f32 %v2146, 0.0
        %v2211 = vmax.f32 %v2147, 0.0
        %v2212 = vmax.f32 %v2148, 0.0
        %v2213 = vmax.f32 %v2149, 0.0
        %v2214 = vmax.f32 %v2150, 0.0
        %v2215 = vmax.f32 %v2151, 0.0
        %v2216 = vmax.f32 %v2152, 0.0
        %v2217 = vmax.f32 %v2153, 0.0
        %v2218 = vmax.f32 %v2154, 0.0
        %v2219 = vmax.f32 %v2155, 0.0
        %v2220 = vmax.f32 %v2156, 0.0
        %v2221 = vmax.f32 %v2157, 0.0
        %v2222 = vmax.f32 %v2158, 0.0
        %v2223 = vmax.f32 %v2159, 0.0
        %v2224 = vmax.f32 %v2160, 0.0
        %v2225 = vmax.f32 %v2161, 0.0
        %v2226 = vmax.f32 %v2162, 0.0
        %v2227 = vmax.f32 %v2163, 0.0
        %v2228 = vmax.f32 %v2164, 0.0
        %v2229 = vmax.f32 %v2165, 0.0
        %v2230 = vmax.f32 %v2166, 0.0
        %v2231 = vmax.f32 %v2167, 0.0
        %v2232 = vmax.f32 %v2168, 0.0
        %v2233 = vmax.f32 %v2169, 0.0
        %v2234 = vmax.f32 %v2170, 0.0
        %v2235 = vmax.f32 %v2171, 0.0
        %v2236 = vpack.c.bf16 %v2176, %v2172
        %v2237 = vpack.c.bf16 %v2177, %v2173
        %v2238 = vpack.c.bf16 %v2178, %v2174
        %v2239 = vpack.c.bf16 %v2179, %v2175
        %v2240 = vpack.c.bf16 %v2184, %v2180
        %v2241 = vpack.c.bf16 %v2185, %v2181
        %v2242 = vpack.c.bf16 %v2186, %v2182
        %v2243 = vpack.c.bf16 %v2187, %v2183
        %v2244 = vpack.c.bf16 %v2192, %v2188
        %v2245 = vpack.c.bf16 %v2193, %v2189
        %v2246 = vpack.c.bf16 %v2194, %v2190
        %v2247 = vpack.c.bf16 %v2195, %v2191
        %v2248 = vpack.c.bf16 %v2200, %v2196
        %v2249 = vpack.c.bf16 %v2201, %v2197
        %v2250 = vpack.c.bf16 %v2202, %v2198
        %v2251 = vpack.c.bf16 %v2203, %v2199
        %v2252 = vpack.c.bf16 %v2208, %v2204
        %v2253 = vpack.c.bf16 %v2209, %v2205
        %v2254 = vpack.c.bf16 %v2210, %v2206
        %v2255 = vpack.c.bf16 %v2211, %v2207
        %v2256 = vpack.c.bf16 %v2216, %v2212
        %v2257 = vpack.c.bf16 %v2217, %v2213
        %v2258 = vpack.c.bf16 %v2218, %v2214
        %v2259 = vpack.c.bf16 %v2219, %v2215
        %v2260 = vpack.c.bf16 %v2224, %v2220
        %v2261 = vpack.c.bf16 %v2225, %v2221
        %v2262 = vpack.c.bf16 %v2226, %v2222
        %v2263 = vpack.c.bf16 %v2227, %v2223
        %v2264 = vpack.c.bf16 %v2232, %v2228
        %v2265 = vpack.c.bf16 %v2233, %v2229
        %v2266 = vpack.c.bf16 %v2234, %v2230
        %v2267 = vpack.c.bf16 %v2235, %v2231
        %v2268 = vld [vmem:[#allocation7] sm:$0xff]
        %v2269 = vld [vmem:[#allocation7 + $0x8] sm:$0xff]
        %v2270 = vld [vmem:[#allocation7 + $0x10] sm:$0xff]
        %v2271 = vld [vmem:[#allocation7 + $0x18] sm:$0xff]
        %v2272 = vld [vmem:[#allocation7 + $0x20] sm:$0xff]
        %v2273 = vld [vmem:[#allocation7 + $0x28] sm:$0xff]
        %v2274 = vld [vmem:[#allocation7 + $0x30] sm:$0xff]
        %v2275 = vld [vmem:[#allocation7 + $0x38] sm:$0xff]
        %v2276 = vld [vmem:[#allocation7 + $0x40] sm:$0xff]
        %v2277 = vld [vmem:[#allocation7 + $0x48] sm:$0xff]
        %v2278 = vld [vmem:[#allocation7 + $0x50] sm:$0xff]
        %v2279 = vld [vmem:[#allocation7 + $0x58] sm:$0xff]
        %v2280 = vld [vmem:[#allocation7 + $0x60] sm:$0xff]
        %v2281 = vld [vmem:[#allocation7 + $0x68] sm:$0xff]
        %v2282 = vld [vmem:[#allocation7 + $0x70] sm:$0xff]
        %v2283 = vld [vmem:[#allocation7 + $0x78] sm:$0xff]
        %v2284 = vld [vmem:[#allocation7 + $0x80] sm:$0xff]
        %v2285 = vld [vmem:[#allocation7 + $0x88] sm:$0xff]
        %v2286 = vld [vmem:[#allocation7 + $0x90] sm:$0xff]
        %v2287 = vld [vmem:[#allocation7 + $0x98] sm:$0xff]
        %v2288 = vld [vmem:[#allocation7 + $0xa0] sm:$0xff]
        %v2289 = vld [vmem:[#allocation7 + $0xa8] sm:$0xff]
        %v2290 = vld [vmem:[#allocation7 + $0xb0] sm:$0xff]
        %v2291 = vld [vmem:[#allocation7 + $0xb8] sm:$0xff]
        %v2292 = vld [vmem:[#allocation7 + $0xc0] sm:$0xff]
        %v2293 = vld [vmem:[#allocation7 + $0xc8] sm:$0xff]
        %v2294 = vld [vmem:[#allocation7 + $0xd0] sm:$0xff]
        %v2295 = vld [vmem:[#allocation7 + $0xd8] sm:$0xff]
        %v2296 = vld [vmem:[#allocation7 + $0xe0] sm:$0xff]
        %v2297 = vld [vmem:[#allocation7 + $0xe8] sm:$0xff]
        %v2298 = vld [vmem:[#allocation7 + $0xf0] sm:$0xff]
        %v2299 = vld [vmem:[#allocation7 + $0xf8] sm:$0xff]
        %v2300 = vld [vmem:[#allocation7 + $0x100] sm:$0xff]
        %v2301 = vld [vmem:[#allocation7 + $0x108] sm:$0xff]
        %v2302 = vld [vmem:[#allocation7 + $0x110] sm:$0xff]
        %v2303 = vld [vmem:[#allocation7 + $0x118] sm:$0xff]
        %v2304 = vld [vmem:[#allocation7 + $0x120] sm:$0xff]
        %v2305 = vld [vmem:[#allocation7 + $0x128] sm:$0xff]
        %v2306 = vld [vmem:[#allocation7 + $0x130] sm:$0xff]
        %v2307 = vld [vmem:[#allocation7 + $0x138] sm:$0xff]
        %v2308 = vld [vmem:[#allocation7 + $0x140] sm:$0xff]
        %v2309 = vld [vmem:[#allocation7 + $0x148] sm:$0xff]
        %v2310 = vld [vmem:[#allocation7 + $0x150] sm:$0xff]
        %v2311 = vld [vmem:[#allocation7 + $0x158] sm:$0xff]
        %v2312 = vld [vmem:[#allocation7 + $0x160] sm:$0xff]
        %v2313 = vld [vmem:[#allocation7 + $0x168] sm:$0xff]
        %v2314 = vld [vmem:[#allocation7 + $0x170] sm:$0xff]
        %v2315 = vld [vmem:[#allocation7 + $0x178] sm:$0xff]
        %v2316 = vld [vmem:[#allocation7 + $0x180] sm:$0xff]
        %v2317 = vld [vmem:[#allocation7 + $0x188] sm:$0xff]
        %v2318 = vld [vmem:[#allocation7 + $0x190] sm:$0xff]
        %v2319 = vld [vmem:[#allocation7 + $0x198] sm:$0xff]
        %v2320 = vld [vmem:[#allocation7 + $0x1a0] sm:$0xff]
        %v2321 = vld [vmem:[#allocation7 + $0x1a8] sm:$0xff]
        %v2322 = vld [vmem:[#allocation7 + $0x1b0] sm:$0xff]
        %v2323 = vld [vmem:[#allocation7 + $0x1b8] sm:$0xff]
        %v2324 = vld [vmem:[#allocation7 + $0x1c0] sm:$0xff]
        %v2325 = vld [vmem:[#allocation7 + $0x1c8] sm:$0xff]
        %v2326 = vld [vmem:[#allocation7 + $0x1d0] sm:$0xff]
        %v2327 = vld [vmem:[#allocation7 + $0x1d8] sm:$0xff]
        %v2328 = vld [vmem:[#allocation7 + $0x1e0] sm:$0xff]
        %v2329 = vld [vmem:[#allocation7 + $0x1e8] sm:$0xff]
        %v2330 = vld [vmem:[#allocation7 + $0x1f0] sm:$0xff]
        %v2331 = vld [vmem:[#allocation7 + $0x1f8] sm:$0xff]
        %v2332 = vld [vmem:[%s9] sm:$0x3]
        %v2334 = vlaneseq
        %v2335 = vshrl.u32 %v2334, 7
        %v2336 = vsub.s32 0, %v2335
        %v2337 = vrot.slane %v2332, %v2336
        %v2338 = vlaneseq
        %v2339 = vshrl.u32 %v2338, 7
        %v2340 = vsub.s32 1, %v2339
        %v2341 = vrot.slane %v2332, %v2340
        %v2408 = vunpack.c.l.b16 %v2268
        %v2409 = vunpack.c.h.b16 %v2268
        %v2410 = vunpack.c.l.b16 %v2269
        %v2411 = vunpack.c.h.b16 %v2269
        %v2412 = vunpack.c.l.b16 %v2270
        %v2413 = vunpack.c.h.b16 %v2270
        %v2414 = vunpack.c.l.b16 %v2271
        %v2415 = vunpack.c.h.b16 %v2271
        %v2416 = vunpack.c.l.b16 %v2272
        %v2417 = vunpack.c.h.b16 %v2272
        %v2418 = vunpack.c.l.b16 %v2273
        %v2419 = vunpack.c.h.b16 %v2273
        %v2420 = vunpack.c.l.b16 %v2274
        %v2421 = vunpack.c.h.b16 %v2274
        %v2422 = vunpack.c.l.b16 %v2275
        %v2423 = vunpack.c.h.b16 %v2275
        %v2424 = vunpack.c.l.b16 %v2276
        %v2425 = vunpack.c.h.b16 %v2276
        %v2426 = vunpack.c.l.b16 %v2277
        %v2427 = vunpack.c.h.b16 %v2277
        %v2428 = vunpack.c.l.b16 %v2278
        %v2429 = vunpack.c.h.b16 %v2278
        %v2430 = vunpack.c.l.b16 %v2279
        %v2431 = vunpack.c.h.b16 %v2279
        %v2432 = vunpack.c.l.b16 %v2280
        %v2433 = vunpack.c.h.b16 %v2280
        %v2434 = vunpack.c.l.b16 %v2281
        %v2435 = vunpack.c.h.b16 %v2281
        %v2436 = vunpack.c.l.b16 %v2282
        %v2437 = vunpack.c.h.b16 %v2282
        %v2438 = vunpack.c.l.b16 %v2283
        %v2439 = vunpack.c.h.b16 %v2283
        %v2440 = vunpack.c.l.b16 %v2284
        %v2441 = vunpack.c.h.b16 %v2284
        %v2442 = vunpack.c.l.b16 %v2285
        %v2443 = vunpack.c.h.b16 %v2285
        %v2444 = vunpack.c.l.b16 %v2286
        %v2445 = vunpack.c.h.b16 %v2286
        %v2446 = vunpack.c.l.b16 %v2287
        %v2447 = vunpack.c.h.b16 %v2287
        %v2448 = vunpack.c.l.b16 %v2288
        %v2449 = vunpack.c.h.b16 %v2288
        %v2450 = vunpack.c.l.b16 %v2289
        %v2451 = vunpack.c.h.b16 %v2289
        %v2452 = vunpack.c.l.b16 %v2290
        %v2453 = vunpack.c.h.b16 %v2290
        %v2454 = vunpack.c.l.b16 %v2291
        %v2455 = vunpack.c.h.b16 %v2291
        %v2456 = vunpack.c.l.b16 %v2292
        %v2457 = vunpack.c.h.b16 %v2292
        %v2458 = vunpack.c.l.b16 %v2293
        %v2459 = vunpack.c.h.b16 %v2293
        %v2460 = vunpack.c.l.b16 %v2294
        %v2461 = vunpack.c.h.b16 %v2294
        %v2462 = vunpack.c.l.b16 %v2295
        %v2463 = vunpack.c.h.b16 %v2295
        %v2464 = vunpack.c.l.b16 %v2296
        %v2465 = vunpack.c.h.b16 %v2296
        %v2466 = vunpack.c.l.b16 %v2297
        %v2467 = vunpack.c.h.b16 %v2297
        %v2468 = vunpack.c.l.b16 %v2298
        %v2469 = vunpack.c.h.b16 %v2298
        %v2470 = vunpack.c.l.b16 %v2299
        %v2471 = vunpack.c.h.b16 %v2299
        %v2472 = vunpack.c.l.b16 %v2300
        %v2473 = vunpack.c.h.b16 %v2300
        %v2474 = vunpack.c.l.b16 %v2301
        %v2475 = vunpack.c.h.b16 %v2301
        %v2476 = vunpack.c.l.b16 %v2302
        %v2477 = vunpack.c.h.b16 %v2302
        %v2478 = vunpack.c.l.b16 %v2303
        %v2479 = vunpack.c.h.b16 %v2303
        %v2480 = vunpack.c.l.b16 %v2304
        %v2481 = vunpack.c.h.b16 %v2304
        %v2482 = vunpack.c.l.b16 %v2305
        %v2483 = vunpack.c.h.b16 %v2305
        %v2484 = vunpack.c.l.b16 %v2306
        %v2485 = vunpack.c.h.b16 %v2306
        %v2486 = vunpack.c.l.b16 %v2307
        %v2487 = vunpack.c.h.b16 %v2307
        %v2488 = vunpack.c.l.b16 %v2308
        %v2489 = vunpack.c.h.b16 %v2308
        %v2490 = vunpack.c.l.b16 %v2309
        %v2491 = vunpack.c.h.b16 %v2309
        %v2492 = vunpack.c.l.b16 %v2310
        %v2493 = vunpack.c.h.b16 %v2310
        %v2494 = vunpack.c.l.b16 %v2311
        %v2495 = vunpack.c.h.b16 %v2311
        %v2496 = vunpack.c.l.b16 %v2312
        %v2497 = vunpack.c.h.b16 %v2312
        %v2498 = vunpack.c.l.b16 %v2313
        %v2499 = vunpack.c.h.b16 %v2313
        %v2500 = vunpack.c.l.b16 %v2314
        %v2501 = vunpack.c.h.b16 %v2314
        %v2502 = vunpack.c.l.b16 %v2315
        %v2503 = vunpack.c.h.b16 %v2315
        %v2504 = vunpack.c.l.b16 %v2316
        %v2505 = vunpack.c.h.b16 %v2316
        %v2506 = vunpack.c.l.b16 %v2317
        %v2507 = vunpack.c.h.b16 %v2317
        %v2508 = vunpack.c.l.b16 %v2318
        %v2509 = vunpack.c.h.b16 %v2318
        %v2510 = vunpack.c.l.b16 %v2319
        %v2511 = vunpack.c.h.b16 %v2319
        %v2512 = vunpack.c.l.b16 %v2320
        %v2513 = vunpack.c.h.b16 %v2320
        %v2514 = vunpack.c.l.b16 %v2321
        %v2515 = vunpack.c.h.b16 %v2321
        %v2516 = vunpack.c.l.b16 %v2322
        %v2517 = vunpack.c.h.b16 %v2322
        %v2518 = vunpack.c.l.b16 %v2323
        %v2519 = vunpack.c.h.b16 %v2323
        %v2520 = vunpack.c.l.b16 %v2324
        %v2521 = vunpack.c.h.b16 %v2324
        %v2522 = vunpack.c.l.b16 %v2325
        %v2523 = vunpack.c.h.b16 %v2325
        %v2524 = vunpack.c.l.b16 %v2326
        %v2525 = vunpack.c.h.b16 %v2326
        %v2526 = vunpack.c.l.b16 %v2327
        %v2527 = vunpack.c.h.b16 %v2327
        %v2528 = vunpack.c.l.b16 %v2328
        %v2529 = vunpack.c.h.b16 %v2328
        %v2530 = vunpack.c.l.b16 %v2329
        %v2531 = vunpack.c.h.b16 %v2329
        %v2532 = vunpack.c.l.b16 %v2330
        %v2533 = vunpack.c.h.b16 %v2330
        %v2534 = vunpack.c.l.b16 %v2331
        %v2535 = vunpack.c.h.b16 %v2331
        %v2536 = vpack.c.b16 %v2410, %v2408
        %v2537 = vpack.c.b16 %v2411, %v2409
        %v2538 = vpack.c.b16 %v2414, %v2412
        %v2539 = vpack.c.b16 %v2415, %v2413
        %v2540 = vpack.c.b16 %v2418, %v2416
        %v2541 = vpack.c.b16 %v2419, %v2417
        %v2542 = vpack.c.b16 %v2422, %v2420
        %v2543 = vpack.c.b16 %v2423, %v2421
        %v2544 = vpack.c.b16 %v2426, %v2424
        %v2545 = vpack.c.b16 %v2427, %v2425
        %v2546 = vpack.c.b16 %v2430, %v2428
        %v2547 = vpack.c.b16 %v2431, %v2429
        %v2548 = vpack.c.b16 %v2434, %v2432
        %v2549 = vpack.c.b16 %v2435, %v2433
        %v2550 = vpack.c.b16 %v2438, %v2436
        %v2551 = vpack.c.b16 %v2439, %v2437
        %v2552 = vpack.c.b16 %v2442, %v2440
        %v2553 = vpack.c.b16 %v2443, %v2441
        %v2554 = vpack.c.b16 %v2446, %v2444
        %v2555 = vpack.c.b16 %v2447, %v2445
        %v2556 = vpack.c.b16 %v2450, %v2448
        %v2557 = vpack.c.b16 %v2451, %v2449
        %v2558 = vpack.c.b16 %v2454, %v2452
        %v2559 = vpack.c.b16 %v2455, %v2453
        %v2560 = vpack.c.b16 %v2458, %v2456
        %v2561 = vpack.c.b16 %v2459, %v2457
        %v2562 = vpack.c.b16 %v2462, %v2460
        %v2563 = vpack.c.b16 %v2463, %v2461
        %v2564 = vpack.c.b16 %v2466, %v2464
        %v2565 = vpack.c.b16 %v2467, %v2465
        %v2566 = vpack.c.b16 %v2470, %v2468
        %v2567 = vpack.c.b16 %v2471, %v2469
        %v2568 = vpack.c.b16 %v2474, %v2472
        %v2569 = vpack.c.b16 %v2475, %v2473
        %v2570 = vpack.c.b16 %v2478, %v2476
        %v2571 = vpack.c.b16 %v2479, %v2477
        %v2572 = vpack.c.b16 %v2482, %v2480
        %v2573 = vpack.c.b16 %v2483, %v2481
        %v2574 = vpack.c.b16 %v2486, %v2484
        %v2575 = vpack.c.b16 %v2487, %v2485
        %v2576 = vpack.c.b16 %v2490, %v2488
        %v2577 = vpack.c.b16 %v2491, %v2489
        %v2578 = vpack.c.b16 %v2494, %v2492
        %v2579 = vpack.c.b16 %v2495, %v2493
        %v2580 = vpack.c.b16 %v2498, %v2496
        %v2581 = vpack.c.b16 %v2499, %v2497
        %v2582 = vpack.c.b16 %v2502, %v2500
        %v2583 = vpack.c.b16 %v2503, %v2501
        %v2584 = vpack.c.b16 %v2506, %v2504
        %v2585 = vpack.c.b16 %v2507, %v2505
        %v2586 = vpack.c.b16 %v2510, %v2508
        %v2587 = vpack.c.b16 %v2511, %v2509
        %v2588 = vpack.c.b16 %v2514, %v2512
        %v2589 = vpack.c.b16 %v2515, %v2513
        %v2590 = vpack.c.b16 %v2518, %v2516
        %v2591 = vpack.c.b16 %v2519, %v2517
        %v2592 = vpack.c.b16 %v2522, %v2520
        %v2593 = vpack.c.b16 %v2523, %v2521
        %v2594 = vpack.c.b16 %v2526, %v2524
        %v2595 = vpack.c.b16 %v2527, %v2525
        %v2596 = vpack.c.b16 %v2530, %v2528
        %v2597 = vpack.c.b16 %v2531, %v2529
        %v2598 = vpack.c.b16 %v2534, %v2532
        %v2599 = vpack.c.b16 %v2535, %v2533
        %2664 = vmatprep.subr.bf16.mxu0 %v2551
        %2665 = vmatpush1.bf16.msra.mxu0 %v2550
        %2666 = vmatprep.subr.bf16.mxu0 %v2549
        %2667 = vmatpush1.bf16.msra.mxu0 %v2548
        %2668 = vmatprep.subr.bf16.mxu0 %v2547
        %2669 = vmatpush1.bf16.msra.mxu0 %v2546
        %2670 = vmatprep.subr.bf16.mxu0 %v2545
        %2671 = vmatpush1.bf16.msra.mxu0 %v2544
        %2672 = vmatprep.subr.bf16.mxu0 %v2543
        %2673 = vmatpush1.bf16.msra.mxu0 %v2542
        %2674 = vmatprep.subr.bf16.mxu0 %v2541
        %2675 = vmatpush1.bf16.msra.mxu0 %v2540
        %2676 = vmatprep.subr.bf16.mxu0 %v2539
        %2677 = vmatpush1.bf16.msra.mxu0 %v2538
        %2678 = vmatprep.subr.bf16.mxu0 %v2537
        %2679 = vmatpush1.bf16.msra.mxu0 %v2536
        %2680 = vmatprep.subr.bf16.mxu0 %v2567
        %2681 = vmatpush2.bf16.msra.mxu0 %v2566
        %2682 = vmatprep.subr.bf16.mxu0 %v2565
        %2683 = vmatpush2.bf16.msra.mxu0 %v2564
        %2684 = vmatprep.subr.bf16.mxu0 %v2563
        %2685 = vmatpush2.bf16.msra.mxu0 %v2562
        %2686 = vmatprep.subr.bf16.mxu0 %v2561
        %2687 = vmatpush2.bf16.msra.mxu0 %v2560
        %2688 = vmatprep.subr.bf16.mxu0 %v2559
        %2689 = vmatpush2.bf16.msra.mxu0 %v2558
        %2690 = vmatprep.subr.bf16.mxu0 %v2557
        %2691 = vmatpush2.bf16.msra.mxu0 %v2556
        %2692 = vmatprep.subr.bf16.mxu0 %v2555
        %2693 = vmatpush2.bf16.msra.mxu0 %v2554
        %2694 = vmatprep.subr.bf16.mxu0 %v2553
        %2695 = vmatpush2.bf16.msra.mxu0 %v2552
        %2696 = vmatprep.mubr.bf16.mxu0 %v2237
        %2697 = vmatmul.mubr.bf16.gmra.mxu0 %v2236
        %v2698 = vpop.f32.mrf.mxu0
        %v2699 = vadd.f32 %v2337, %v2698
        %v2700 = vpop.f32.mrf.mxu0
        %v2701 = vadd.f32 %v2341, %v2700
        %v2702 = vpop.f32.mrf.mxu0
        %v2703 = vadd.f32 %v2337, %v2702
        %v2704 = vpop.f32.mrf.mxu0
        %v2705 = vadd.f32 %v2341, %v2704
        %2706 = vmatprep.mubr.bf16.mxu0 %v2241
        %2707 = vmatmul.mubr.bf16.gmra.mxu0 %v2240
        %v2708 = vpop.f32.mrf.mxu0
        %v2709 = vadd.f32 %v2337, %v2708
        %v2710 = vpop.f32.mrf.mxu0
        %v2711 = vadd.f32 %v2341, %v2710
        %v2712 = vpop.f32.mrf.mxu0
        %v2713 = vadd.f32 %v2337, %v2712
        %v2714 = vpop.f32.mrf.mxu0
        %v2715 = vadd.f32 %v2341, %v2714
        %2716 = vmatprep.mubr.bf16.mxu0 %v2245
        %2717 = vmatmul.mubr.bf16.gmra.mxu0 %v2244
        %v2718 = vpop.f32.mrf.mxu0
        %v2719 = vadd.f32 %v2337, %v2718
        %v2720 = vpop.f32.mrf.mxu0
        %v2721 = vadd.f32 %v2341, %v2720
        %v2722 = vpop.f32.mrf.mxu0
        %v2723 = vadd.f32 %v2337, %v2722
        %v2724 = vpop.f32.mrf.mxu0
        %v2725 = vadd.f32 %v2341, %v2724
        %2726 = vmatprep.mubr.bf16.mxu0 %v2249
        %2727 = vmatmul.mubr.bf16.gmra.mxu0 %v2248
        %v2728 = vpop.f32.mrf.mxu0
        %v2729 = vadd.f32 %v2337, %v2728
        %v2730 = vpop.f32.mrf.mxu0
        %v2731 = vadd.f32 %v2341, %v2730
        %v2732 = vpop.f32.mrf.mxu0
        %v2733 = vadd.f32 %v2337, %v2732
        %v2734 = vpop.f32.mrf.mxu0
        %v2735 = vadd.f32 %v2341, %v2734
        %2736 = vmatprep.mubr.bf16.mxu0 %v2253
        %2737 = vmatmul.mubr.bf16.gmra.mxu0 %v2252
        %v2738 = vpop.f32.mrf.mxu0
        %v2739 = vadd.f32 %v2337, %v2738
        %v2740 = vpop.f32.mrf.mxu0
        %v2741 = vadd.f32 %v2341, %v2740
        %v2742 = vpop.f32.mrf.mxu0
        %v2743 = vadd.f32 %v2337, %v2742
        %v2744 = vpop.f32.mrf.mxu0
        %v2745 = vadd.f32 %v2341, %v2744
        %2746 = vmatprep.mubr.bf16.mxu0 %v2257
        %2747 = vmatmul.mubr.bf16.gmra.mxu0 %v2256
        %v2748 = vpop.f32.mrf.mxu0
        %v2749 = vadd.f32 %v2337, %v2748
        %v2750 = vpop.f32.mrf.mxu0
        %v2751 = vadd.f32 %v2341, %v2750
        %v2752 = vpop.f32.mrf.mxu0
        %v2753 = vadd.f32 %v2337, %v2752
        %v2754 = vpop.f32.mrf.mxu0
        %v2755 = vadd.f32 %v2341, %v2754
        %2756 = vmatprep.mubr.bf16.mxu0 %v2261
        %2757 = vmatmul.mubr.bf16.gmra.mxu0 %v2260
        %v2758 = vpop.f32.mrf.mxu0
        %v2759 = vadd.f32 %v2337, %v2758
        %v2760 = vpop.f32.mrf.mxu0
        %v2761 = vadd.f32 %v2341, %v2760
        %v2762 = vpop.f32.mrf.mxu0
        %v2763 = vadd.f32 %v2337, %v2762
        %v2764 = vpop.f32.mrf.mxu0
        %v2765 = vadd.f32 %v2341, %v2764
        %2766 = vmatprep.mubr.bf16.mxu0 %v2265
        %2767 = vmatmul.mubr.bf16.gmra.mxu0 %v2264
        %v2768 = vpop.f32.mrf.mxu0
        %v2769 = vadd.f32 %v2337, %v2768
        %v2770 = vpop.f32.mrf.mxu0
        %v2771 = vadd.f32 %v2341, %v2770
        %v2772 = vpop.f32.mrf.mxu0
        %v2773 = vadd.f32 %v2337, %v2772
        %v2774 = vpop.f32.mrf.mxu0
        %v2775 = vadd.f32 %v2341, %v2774
        %2776 = vdwg.mxu0
        %2777 = vmatprep.subr.bf16.mxu0 %v2583
        %2778 = vmatpush1.bf16.msra.mxu0 %v2582
        %2779 = vmatprep.subr.bf16.mxu0 %v2581
        %2780 = vmatpush1.bf16.msra.mxu0 %v2580
        %2781 = vmatprep.subr.bf16.mxu0 %v2579
        %2782 = vmatpush1.bf16.msra.mxu0 %v2578
        %2783 = vmatprep.subr.bf16.mxu0 %v2577
        %2784 = vmatpush1.bf16.msra.mxu0 %v2576
        %2785 = vmatprep.subr.bf16.mxu0 %v2575
        %2786 = vmatpush1.bf16.msra.mxu0 %v2574
        %2787 = vmatprep.subr.bf16.mxu0 %v2573
        %2788 = vmatpush1.bf16.msra.mxu0 %v2572
        %2789 = vmatprep.subr.bf16.mxu0 %v2571
        %2790 = vmatpush1.bf16.msra.mxu0 %v2570
        %2791 = vmatprep.subr.bf16.mxu0 %v2569
        %2792 = vmatpush1.bf16.msra.mxu0 %v2568
        %2793 = vmatprep.subr.bf16.mxu0 %v2599
        %2794 = vmatpush2.bf16.msra.mxu0 %v2598
        %2795 = vmatprep.subr.bf16.mxu0 %v2597
        %2796 = vmatpush2.bf16.msra.mxu0 %v2596
        %2797 = vmatprep.subr.bf16.mxu0 %v2595
        %2798 = vmatpush2.bf16.msra.mxu0 %v2594
        %2799 = vmatprep.subr.bf16.mxu0 %v2593
        %2800 = vmatpush2.bf16.msra.mxu0 %v2592
        %2801 = vmatprep.subr.bf16.mxu0 %v2591
        %2802 = vmatpush2.bf16.msra.mxu0 %v2590
        %2803 = vmatprep.subr.bf16.mxu0 %v2589
        %2804 = vmatpush2.bf16.msra.mxu0 %v2588
        %2805 = vmatprep.subr.bf16.mxu0 %v2587
        %2806 = vmatpush2.bf16.msra.mxu0 %v2586
        %2807 = vmatprep.subr.bf16.mxu0 %v2585
        %2808 = vmatpush2.bf16.msra.mxu0 %v2584
        %2809 = vmatprep.mubr.bf16.mxu0 %v2239
        %2810 = vmatmul.mubr.bf16.gmra.mxu0 %v2238
        %v2811 = vpop.f32.mrf.mxu0
        %v2812 = vadd.f32 %v2699, %v2811
        %v2813 = vpop.f32.mrf.mxu0
        %v2814 = vadd.f32 %v2701, %v2813
        %v2815 = vpop.f32.mrf.mxu0
        %v2816 = vadd.f32 %v2703, %v2815
        %v2817 = vpop.f32.mrf.mxu0
        %v2818 = vadd.f32 %v2705, %v2817
        %2819 = vmatprep.mubr.bf16.mxu0 %v2243
        %2820 = vmatmul.mubr.bf16.gmra.mxu0 %v2242
        %v2821 = vpop.f32.mrf.mxu0
        %v2822 = vadd.f32 %v2709, %v2821
        %v2823 = vpop.f32.mrf.mxu0
        %v2824 = vadd.f32 %v2711, %v2823
        %v2825 = vpop.f32.mrf.mxu0
        %v2826 = vadd.f32 %v2713, %v2825
        %v2827 = vpop.f32.mrf.mxu0
        %v2828 = vadd.f32 %v2715, %v2827
        %2829 = vmatprep.mubr.bf16.mxu0 %v2247
        %2830 = vmatmul.mubr.bf16.gmra.mxu0 %v2246
        %v2831 = vpop.f32.mrf.mxu0
        %v2832 = vadd.f32 %v2719, %v2831
        %v2833 = vpop.f32.mrf.mxu0
        %v2834 = vadd.f32 %v2721, %v2833
        %v2835 = vpop.f32.mrf.mxu0
        %v2836 = vadd.f32 %v2723, %v2835
        %v2837 = vpop.f32.mrf.mxu0
        %v2838 = vadd.f32 %v2725, %v2837
        %2839 = vmatprep.mubr.bf16.mxu0 %v2251
        %2840 = vmatmul.mubr.bf16.gmra.mxu0 %v2250
        %v2841 = vpop.f32.mrf.mxu0
        %v2842 = vadd.f32 %v2729, %v2841
        %v2843 = vpop.f32.mrf.mxu0
        %v2844 = vadd.f32 %v2731, %v2843
        %v2845 = vpop.f32.mrf.mxu0
        %v2846 = vadd.f32 %v2733, %v2845
        %v2847 = vpop.f32.mrf.mxu0
        %v2848 = vadd.f32 %v2735, %v2847
        %2849 = vmatprep.mubr.bf16.mxu0 %v2255
        %2850 = vmatmul.mubr.bf16.gmra.mxu0 %v2254
        %v2851 = vpop.f32.mrf.mxu0
        %v2852 = vadd.f32 %v2739, %v2851
        %v2853 = vpop.f32.mrf.mxu0
        %v2854 = vadd.f32 %v2741, %v2853
        %v2855 = vpop.f32.mrf.mxu0
        %v2856 = vadd.f32 %v2743, %v2855
        %v2857 = vpop.f32.mrf.mxu0
        %v2858 = vadd.f32 %v2745, %v2857
        %2859 = vmatprep.mubr.bf16.mxu0 %v2259
        %2860 = vmatmul.mubr.bf16.gmra.mxu0 %v2258
        %v2861 = vpop.f32.mrf.mxu0
        %v2862 = vadd.f32 %v2749, %v2861
        %v2863 = vpop.f32.mrf.mxu0
        %v2864 = vadd.f32 %v2751, %v2863
        %v2865 = vpop.f32.mrf.mxu0
        %v2866 = vadd.f32 %v2753, %v2865
        %v2867 = vpop.f32.mrf.mxu0
        %v2868 = vadd.f32 %v2755, %v2867
        %2869 = vmatprep.mubr.bf16.mxu0 %v2263
        %2870 = vmatmul.mubr.bf16.gmra.mxu0 %v2262
        %v2871 = vpop.f32.mrf.mxu0
        %v2872 = vadd.f32 %v2759, %v2871
        %v2873 = vpop.f32.mrf.mxu0
        %v2874 = vadd.f32 %v2761, %v2873
        %v2875 = vpop.f32.mrf.mxu0
        %v2876 = vadd.f32 %v2763, %v2875
        %v2877 = vpop.f32.mrf.mxu0
        %v2878 = vadd.f32 %v2765, %v2877
        %2879 = vmatprep.mubr.bf16.mxu0 %v2267
        %2880 = vmatmul.mubr.bf16.gmra.mxu0 %v2266
        %v2881 = vpop.f32.mrf.mxu0
        %v2882 = vadd.f32 %v2769, %v2881
        %v2883 = vpop.f32.mrf.mxu0
        %v2884 = vadd.f32 %v2771, %v2883
        %v2885 = vpop.f32.mrf.mxu0
        %v2886 = vadd.f32 %v2773, %v2885
        %v2887 = vpop.f32.mrf.mxu0
        %v2888 = vadd.f32 %v2775, %v2887
        %2889 = vdwg.mxu0
        %v2890 = vmax.f32 %v2812, %v2822
        %v2891 = vmax.f32 %v2816, %v2826
        %v2892 = vmax.f32 %v2890, %v2832
        %v2893 = vmax.f32 %v2891, %v2836
        %v2894 = vmax.f32 %v2892, %v2842
        %v2895 = vmax.f32 %v2893, %v2846
        %v2896 = vmax.f32 %v2894, %v2852
        %v2897 = vmax.f32 %v2895, %v2856
        %v2898 = vmax.f32 %v2896, %v2862
        %v2899 = vmax.f32 %v2897, %v2866
        %v2900 = vmax.f32 %v2898, %v2872
        %v2901 = vmax.f32 %v2899, %v2876
        %v2902 = vmax.f32 %v2900, %v2882
        %v2903 = vmax.f32 %v2901, %v2886
        %v2904 = vmax.f32 %v2902, %v2903
        %v2905 = vrot.slane %v2904, 4
        %v2906 = vmax.f32 %v2904, %v2905
        %v2907 = vrot.slane %v2906, 2
        %v2908 = vmax.f32 %v2906, %v2907
        %v2909 = vrot.slane %v2908, 1
        %v2910 = vmax.f32 %v2908, %v2909
        %v2911 = vmax.f32 %v2814, %v2824
        %v2912 = vmax.f32 %v2818, %v2828
        %v2913 = vmax.f32 %v2911, %v2834
        %v2914 = vmax.f32 %v2912, %v2838
        %v2915 = vmax.f32 %v2913, %v2844
        %v2916 = vmax.f32 %v2914, %v2848
        %v2917 = vmax.f32 %v2915, %v2854
        %v2918 = vmax.f32 %v2916, %v2858
        %v2919 = vmax.f32 %v2917, %v2864
        %v2920 = vmax.f32 %v2918, %v2868
        %v2921 = vmax.f32 %v2919, %v2874
        %v2922 = vmax.f32 %v2920, %v2878
        %v2923 = vmax.f32 %v2921, %v2884
        %v2924 = vmax.f32 %v2922, %v2888
        %v2925 = vmax.f32 %v2923, %v2924
        %v2926 = vrot.slane %v2925, 4
        %v2927 = vmax.f32 %v2925, %v2926
        %v2928 = vrot.slane %v2927, 2
        %v2929 = vmax.f32 %v2927, %v2928
        %v2930 = vrot.slane %v2929, 1
        %v2931 = vmax.f32 %v2929, %v2930
        %v2934 = vcombine.low %v2910, %v2931
        %v2936 = vunpack.c.l.s4 1966171168
        %v2937 = vunpack.c.0.s8 %v2936
        %v2938 = vlaneseq
        %v2939 = vshrl.u32 %v2938, 7
        %v2940 = vsub.s32 %v2937, %v2939
        %v2941 = vrot.slane %v2934, %v2940
        %v2943 = vunpack.c.l.s4 1966171168
        %v2944 = vunpack.c.0.s8 %v2943
        %v2945 = vlaneseq
        %v2946 = vshrl.u32 %v2945, 7
        %v2947 = vsub.s32 %v2944, %v2946
        %v2948 = vrot.slane %v2941, %v2947
        %v2950 = vlaneseq
        %vm2951 = vcmp.ge.s32.totalorder %v2950, 0
        %vm2952 = vcmp.lt.s32.totalorder %v2950, 256
        %vm2953 = vmand %vm2951, %vm2952
        %2954 = vst.msk [vmem:[%s396] sm:$0x3] %vm2953, %v2948
        %s2955 = sand.u32 %s249, 1
        %s2956 = scalar_lea.sflag [#allocation4], %s2955
        %s2957 = sand.u32 %s249, 1
        %s2958 = smul.addr %s2957, 2
        %s2959 = scalar_lea.vmem [#allocation8], %s2958
        // Predicated region
        $region73: #{tpu_custom_call.1} parent=59 // pred_check
          %p2960 = pneg %p259
        $region74: #{tpu_custom_call.1} parent=59 // pred_check_branch
          %2962 = sbr.rel (%p2960) target = $region76
        $region75: #{tpu_custom_call.1} parent=59 // pred_region
          %s2964 = ssub.s32 32, 32
          %2965 = vsyncadd %s2956, %s2964
          %s2966 = smul.addr %s26, 2
          %s2967 = smul.addr %s2966, 16
          %s2968 = scalar_lea.hbm %s10, %s2967
          %s2970 = sshll.u32 %s2959, 4
          %s2971 = int_to_ptr.vmem [resolvable:$true] %s2970
          %2973 = dma.vmem_to_hbm [thread:$0]  %s2971, 32, %s2968, %s2956
        $region76: #{tpu_custom_call.1} parent=59 // pred_fallthru
          _
      $region60: #{tpu_custom_call.1} parent=5 // pred_fallthru
        _
      %p2974 = scmp.le.s32.totalorder 2, %s21
      // Predicated region
      $region77: #{tpu_custom_call.1} parent=5 // pred_check
        %p2975 = pneg %p2974
      $region78: #{tpu_custom_call.1} parent=5 // pred_check_branch
        %2977 = sbr.rel (%p2975) target = $region80
      $region79: #{tpu_custom_call.1} parent=5 // pred_region
        %s2978 = ssub.s32 %s21, 2
        // Predicated region
        $region81: #{tpu_custom_call.1} parent=79 // pred_check
          %p2979 = pneg %p265
        $region82: #{tpu_custom_call.1} parent=79 // pred_check_branch
          %2981 = sbr.rel (%p2979) target = $region84
        $region83: #{tpu_custom_call.1} parent=79 // pred_region
          %s2982 = sand.u32 %s250, 1
          %s2983 = scalar_lea.sflag [#allocation4], %s2982
          %s2984 = sand.u32 %s250, 1
          %s2985 = smul.addr %s2984, 2
          %s2986 = scalar_lea.vmem [#allocation8], %s2985
          %2987 = dma.done %s2983, 32
        $region84: #{tpu_custom_call.1} parent=79 // pred_fallthru
          _
      $region80: #{tpu_custom_call.1} parent=5 // pred_fallthru
        _
    $region6: #{tpu_custom_call.1} parent=1 // loop_footer
      %s25 = sadd.s32 1, %s21
    $region7: #{tpu_custom_call.1} parent=1 // loop_footer_branch
      %20 = sbr.rel target = $region3
    $region8: #{tpu_custom_call.1} parent=1 // loop_exit
      _
    %2988 = vsyncpa [#allocation3], 1
    %s2989 = scalar_lea.sflag [#allocation3], 1
    %2990 = vsyncpa %s2989, 1
    %2991 = vsyncpa [#allocation6], 1
    %2992 = vsyncpa [#allocation4], 1
    %s2993 = scalar_lea.sflag [#allocation4], 1
    %2994 = vsyncpa %s2993, 1

</llo_original>
